<compile_context>
chip_gen: v5e
topology: v5e:2x2
jax: 0.10.0
libtpu: 0.0.40
codegen_flags: <defaults>
</compile_context>

<pallas_src>
import functools
import math

import jax
import jax.numpy as jnp
from jax import lax
from jax.experimental import pallas as pl
from jax.experimental.pallas import tpu as pltpu


def _round_up(x, m):
    return (x + m - 1) // m * m


def _gelu(x, approximate):
    if approximate:
        # tanh approximation: single EUP op, near-free when VALU-bound.
        return jax.nn.gelu(x, approximate=True)
    # Exact erf GELU - matches torch.nn.GELU() default.
    return 0.5 * x * (1.0 + lax.erf(x * 0.7071067811865476))


def _mlp_kernel(x_ref, w1_ref, b1_ref, w2_ref, b2_ref, o_ref, acc_ref=None, *,
                n_chunks, chunk, approximate_gelu):
    # Grid: (row_tiles, out_tiles, hidden_blocks); hidden axis is the reduction.
    # x_ref : (tm, in_f_p)   w1_ref: (in_f_p, tk)   b1_ref: (1, tk)
    # w2_ref: (tk, tn)       b2_ref: (1, tn)
    # o_ref : (tm, tn)       acc_ref: (tm, tn) f32 scratch (None when o is f32)
    k = pl.program_id(2)
    acc = o_ref if acc_ref is None else acc_ref

    @pl.when(k == 0)
    def _init():
        acc[...] = jnp.zeros_like(acc)

    x = x_ref[...]
    # Sub-chunk the hidden block: chunk c+1's GELU (VALU/EUP) overlaps chunk
    # c's MXU matmuls and the f32 intermediate stays (tm, chunk).
    for c in range(n_chunks):
        lo, hi = c * chunk, (c + 1) * chunk
        h = jnp.dot(x, w1_ref[:, lo:hi], preferred_element_type=jnp.float32)
        h = _gelu(h + b1_ref[:, lo:hi], approximate_gelu)
        acc[...] += jnp.dot(h.astype(w2_ref.dtype), w2_ref[lo:hi, :],
                            preferred_element_type=jnp.float32).astype(acc.dtype)

    @pl.when(k == pl.num_programs(2) - 1)
    def _finalize():
        o_ref[...] = (acc[...] + b2_ref[...]).astype(o_ref.dtype)


def _tpu_vmem_capacity_bytes():
    try:
        info = pltpu.get_tpu_info()
        cap = getattr(info, "vmem_capacity_bytes", None)
        if cap:
            return int(cap)
    except Exception:
        pass
    return 64 * 1024 * 1024  # conservative fallback (v7x-sized VMEM)


def _tensorcores_per_chip():
    try:
        d = jax.devices()[0]
        n = getattr(d, "num_cores", None)
        if isinstance(n, int) and n >= 1:
            return n
    except Exception:
        pass
    try:
        kind = jax.devices()[0].device_kind.lower()
        if "v7" in kind or "7x" in kind:
            return 2
    except Exception:
        pass
    return 1  # v5e / v6e: single TensorCore per chip


def mlp_forward(x, w1, b1, w2, b2, *, tm=None, tk=512, use_bf16=None,
                approximate_gelu=False):
    """Fused Linear -> GELU -> Linear.  x: (..., in_f) -> (..., out_f).

    use_bf16 (default True): bf16 MXU feeds with f32 accumulation and f32
    bias+GELU.  Set use_bf16=False for bit-faithful f32 torch numerics.
    """
    orig_lead = x.shape[:-1]
    in_f = x.shape[-1]
    hid = w1.shape[1]
    out_f = w2.shape[1]
    assert w1.shape[0] == in_f and w2.shape[0] == hid

    rows = int(math.prod(orig_lead)) if orig_lead else 1
    x2 = x.reshape(rows, in_f)

    if use_bf16 is None:
        use_bf16 = True  # v5e/v6e/v7x MXUs are all bf16-native
    compute_dtype = jnp.bfloat16 if use_bf16 else x.dtype
    out_dtype = x.dtype
    cbytes = jnp.dtype(compute_dtype).itemsize
    obytes = jnp.dtype(out_dtype).itemsize

    # ---- lane-dense feature padding (multiples of 128) -----------------------
    in_f_p = _round_up(in_f, 128)
    out_f_p = _round_up(out_f, 128)
    hid_128 = _round_up(hid, 128)

    # ---- generation-aware VMEM budget ----------------------------------------
    cap = _tpu_vmem_capacity_bytes()
    budget = int(0.70 * cap)

    # ---- tile sizes -----------------------------------------------------------
    tk_eff = min(_round_up(tk, 128), hid_128)
    tn_eff = out_f_p

    if tm is None:
        big = budget >= (80 << 20)  # 128 MiB parts (v5e / v6e)
        tm = (1024 if big else 512) if cbytes == 2 else (512 if big else 256)

    gran = 16 if cbytes == 2 else 8  # bf16 sublane packing is (16, 128)
    tm_eff = max(gran, min(_round_up(tm, gran), _round_up(rows, gran)))

    n_cores = _tensorcores_per_chip()
    if n_cores >= 2 and pl.cdiv(rows, tm_eff) < n_cores and rows >= n_cores * gran:
        # Give every TensorCore at least one row tile (multi-TC chips only).
        tm_eff = max(gran, _round_up(pl.cdiv(rows, n_cores), gran))

    acc_in_out = jnp.dtype(out_dtype) == jnp.dtype(jnp.float32)

    def vmem_estimate(tm_, tk_, tn_):
        return (2 * (tm_ * in_f_p * cbytes          # x tile (double-buffered)
                     + in_f_p * tk_ * cbytes        # W1 block
                     + 8 * tk_ * 4                  # b1 block (sublane padded)
                     + tk_ * tn_ * cbytes           # W2 block
                     + 8 * tn_ * 4                  # b2 block
                     + tm_ * tn_ * obytes)          # out tile
                + (0 if acc_in_out else tm_ * tn_ * 4)   # f32 accumulator
                + tm_ * min(tk_, 256) * 4)          # GELU chunk intermediate

    # Fit loop: shrink tk first (traffic-neutral), then tile out features,
    # then tm (last resort - tm is what keeps the kernel off the weight-stream
    # roofline).
    while vmem_estimate(tm_eff, tk_eff, tn_eff) > budget:
        if tk_eff > 256:
            tk_eff = max(256, _round_up(tk_eff // 2, 128))
        elif tn_eff > 512:
            tn_eff = max(512, _round_up(tn_eff // 2, 128))
        elif tm_eff > gran:
            tm_eff = max(gran, _round_up(tm_eff // 2, gran))
        elif tk_eff > 128:
            tk_eff = 128
        elif tn_eff > 128:
            tn_eff = max(128, _round_up(tn_eff // 2, 128))
        else:
            break

    hid_p = _round_up(hid, tk_eff)            # hidden blocks tile exactly
    out_f_p = _round_up(out_f_p, tn_eff)      # out tiles tile exactly
    chunk = 256 if tk_eff % 256 == 0 else 128
    n_chunks = tk_eff // chunk

    # ---- padding (zero padding is exact: GELU(0)=0, zero weight rows/cols) ---
    if in_f_p != in_f:
        x2 = jnp.pad(x2, ((0, 0), (0, in_f_p - in_f)))
    w1p = jnp.pad(w1, ((0, in_f_p - in_f), (0, hid_p - hid)))
    b1p = jnp.pad(b1, (0, hid_p - hid))
    w2p = jnp.pad(w2, ((0, hid_p - hid), (0, out_f_p - out_f)))
    b2p = jnp.pad(b2, (0, out_f_p - out_f))

    x2 = x2.astype(compute_dtype)
    w1p = w1p.astype(compute_dtype)
    w2p = w2p.astype(compute_dtype)
    b1p = b1p.astype(jnp.float32).reshape(1, hid_p)    # bias + GELU stay in f32
    b2p = b2p.astype(jnp.float32).reshape(1, out_f_p)

    grid = (pl.cdiv(rows, tm_eff), out_f_p // tn_eff, hid_p // tk_eff)
    n_row_tiles, n_out_tiles, _ = grid

    est = vmem_estimate(tm_eff, tk_eff, tn_eff)
    limit_ceiling = max(32 << 20, min(int(0.80 * cap), cap - (10 << 20)))
    vmem_limit = int(min(max(2 * est, 48 << 20), limit_ceiling))
    vmem_limit = max(vmem_limit, min(limit_ceiling, est + (8 << 20)))

    cost = pl.CostEstimate(
        flops=int(2 * rows * (in_f_p * hid_p + hid_p * out_f_p)),
        transcendentals=int(rows * hid_p),
        bytes_accessed=int(
            n_row_tiles * tm_eff * in_f_p * cbytes                   # x
            + n_row_tiles * n_out_tiles * in_f_p * hid_p * cbytes    # W1 re-streamed
            + n_row_tiles * hid_p * out_f_p * cbytes                 # W2 re-streamed
            + n_row_tiles * tm_eff * out_f_p * obytes),              # output
    )

    scratch = [] if acc_in_out else [pltpu.VMEM((tm_eff, tn_eff), jnp.float32)]
    kernel = functools.partial(_mlp_kernel, n_chunks=n_chunks, chunk=chunk,
                               approximate_gelu=approximate_gelu)

    out = pl.pallas_call(
        kernel,
        out_shape=jax.ShapeDtypeStruct((rows, out_f_p), out_dtype),
        grid_spec=pltpu.PrefetchScalarGridSpec(
            num_scalar_prefetch=0,
            grid=grid,
            in_specs=[
                pl.BlockSpec((tm_eff, in_f_p), lambda i, j, k: (i, 0)),
                pl.BlockSpec((in_f_p, tk_eff), lambda i, j, k: (0, k)),
                pl.BlockSpec((1, tk_eff), lambda i, j, k: (0, k)),
                pl.BlockSpec((tk_eff, tn_eff), lambda i, j, k: (k, j)),
                pl.BlockSpec((1, tn_eff), lambda i, j, k: (0, j)),
            ],
            out_specs=pl.BlockSpec((tm_eff, tn_eff), lambda i, j, k: (i, j)),
            scratch_shapes=tuple(scratch),
        ),
        compiler_params=pltpu.CompilerParams(
            dimension_semantics=("parallel", "parallel", "arbitrary"),
            vmem_limit_bytes=vmem_limit,
        ),
        cost_estimate=cost,
    )(x2, w1p, b1p, w2p, b2p)

    if out.shape[1] != out_f:
        out = out[:, :out_f]
    return out.reshape(*orig_lead, out_f)


def init_mlp_params(key, in_features, hidden_features, out_features, dtype=jnp.float32):
    """Deterministic init mirroring nn.Linear's kaiming-uniform/bound scheme."""
    k1, k2, k3, k4 = jax.random.split(key, 4)
    bound1 = 1.0 / math.sqrt(in_features)
    bound2 = 1.0 / math.sqrt(hidden_features)
    # Stored transposed relative to torch (in, out) so the kernel does x @ W.
    w1 = jax.random.uniform(k1, (in_features, hidden_features), dtype, -bound1, bound1)
    b1 = jax.random.uniform(k2, (hidden_features,), dtype, -bound1, bound1)
    w2 = jax.random.uniform(k3, (hidden_features, out_features), dtype, -bound2, bound2)
    b2 = jax.random.uniform(k4, (out_features,), dtype, -bound2, bound2)
    return w1, b1, w2, b2


if __name__ == "__main__":
    key = jax.random.PRNGKey(0)
    kx, kp = jax.random.split(key)

    # Small but non-trivial shapes; feature dims are intentionally NOT
    # 128-aligned to exercise the lane-dense padding path.
    B, N = 2, 256
    in_features = 48
    hidden_features = 96
    out_features = 48  # out_features defaults to in_features in the module

    x = jax.random.normal(kx, (B, N, in_features), dtype=jnp.float32)
    w1, b1, w2, b2 = init_mlp_params(kp, in_features, hidden_features, out_features)

    # Reference in plain JAX (same exact/erf GELU semantics as nn.GELU()).
    h_ref = jax.nn.gelu(x @ w1 + b1, approximate=False)
    y_ref = h_ref @ w2 + b2

    # 1) f32 path: bit-faithful torch semantics, tight tolerance.
    y = jax.block_until_ready(mlp_forward(x, w1, b1, w2, b2, use_bf16=False))
    assert y.shape == (B, N, out_features)
    assert jnp.allclose(y, y_ref, atol=1e-4, rtol=1e-4), float(jnp.max(jnp.abs(y - y_ref)))

    # 2) Default path: bf16 MXU feeds with f32 accumulation - looser tolerance.
    y_bf16 = jax.block_until_ready(mlp_forward(x, w1, b1, w2, b2))
    assert y_bf16.shape == (B, N, out_features)
    assert jnp.allclose(y_bf16, y_ref, atol=1.5e-1, rtol=5e-2)

    # 3) Optional tanh-approx GELU path (different numerics from torch default).
    y_approx = jax.block_until_ready(
        mlp_forward(x, w1, b1, w2, b2, use_bf16=False, approximate_gelu=True))
    y_approx_ref = jax.nn.gelu(x @ w1 + b1, approximate=True) @ w2 + b2
    assert jnp.allclose(y_approx, y_approx_ref, atol=2e-3, rtol=2e-3)

    print("KERNEL_OK")
</pallas_src>

<mosaic_0001>
module attributes {stable_mosaic.version = 11 : i64} {
  func.func @_mlp_kernel(%arg0: i32, %arg1: i32, %arg2: i32, %arg3: memref<256x128xf32, #tpu.memory_space<vmem>>, %arg4: memref<128x128xf32, #tpu.memory_space<vmem>>, %arg5: memref<1x128xf32, #tpu.memory_space<vmem>>, %arg6: memref<128x128xf32, #tpu.memory_space<vmem>>, %arg7: memref<1x128xf32, #tpu.memory_space<vmem>>, %arg8: memref<256x128xf32, #tpu.memory_space<vmem>>) attributes {dimension_semantics = [#tpu.dimension_semantics<parallel>, #tpu.dimension_semantics<parallel>, #tpu.dimension_semantics<arbitrary>], iteration_bounds = array<i64: 2, 1, 1>, scalar_prefetch = 0 : i64, scratch_operands = 0 : i64, tpu.core_type = #tpu.core_type<tc>, window_params = [{transform_indices = @transform_0, window_bounds = array<i64: 256, 128>}, {transform_indices = @transform_1, window_bounds = array<i64: 128, 128>}, {transform_indices = @transform_2, window_bounds = array<i64: 1, 128>}, {transform_indices = @transform_3, window_bounds = array<i64: 128, 128>}, {transform_indices = @transform_4, window_bounds = array<i64: 1, 128>}, {transform_indices = @transform_5, window_bounds = array<i64: 256, 128>}]} {
    %c0_i32 = arith.constant 0 : i32
    %0 = arith.cmpi eq, %arg2, %c0_i32 : i32
    %1 = arith.extui %0 : i1 to i32
    %c0_i32_0 = arith.constant 0 : i32
    %2 = arith.cmpi ne, %1, %c0_i32_0 : i32
    scf.if %2 {
      %cst_18 = arith.constant 0.000000e+00 : f32
      %25 = vector.broadcast %cst_18 : f32 to vector<256x128xf32>
      %c0_19 = arith.constant 0 : index
      %c0_20 = arith.constant 0 : index
      %26 = vector.load %arg8[%c0_19, %c0_20] : memref<256x128xf32, #tpu.memory_space<vmem>>, vector<256x128xf32>
      tpu.vector_store %arg8[%c0_19, %c0_20], %25 {strides = array<i32>} : memref<256x128xf32, #tpu.memory_space<vmem>>, vector<256x128xf32>,
    } else {
    }
    %c0 = arith.constant 0 : index
    %c0_1 = arith.constant 0 : index
    %3 = vector.load %arg3[%c0, %c0_1] : memref<256x128xf32, #tpu.memory_space<vmem>>, vector<256x128xf32>
    %c0_2 = arith.constant 0 : index
    %c0_3 = arith.constant 0 : index
    %4 = vector.load %arg4[%c0_2, %c0_3] : memref<128x128xf32, #tpu.memory_space<vmem>>, vector<128x128xf32>
    %cst = arith.constant dense<0.000000e+00> : vector<256x128xf32>
    %5 = tpu.matmul %3, %4, %cst {dimension_numbers = #tpu.dot_dimension_numbers<[1], [0], [0], [1], [0, 0, 1, 1], [], []>} : vector<256x128xf32>, vector<128x128xf32>, vector<256x128xf32> -> vector<256x128xf32>
    %c0_4 = arith.constant 0 : index
    %c0_5 = arith.constant 0 : index
    %6 = vector.load %arg5[%c0_4, %c0_5] : memref<1x128xf32, #tpu.memory_space<vmem>>, vector<1x128xf32>
    %7 = vector.broadcast %6 : vector<1x128xf32> to vector<256x128xf32>
    %8 = arith.addf %5, %7 : vector<256x128xf32>
    %cst_6 = arith.constant 5.000000e-01 : f32
    %9 = vector.broadcast %cst_6 : f32 to vector<256x128xf32>
    %10 = arith.mulf %9, %8 : vector<256x128xf32>
    %cst_7 = arith.constant 0.707106769 : f32
    %11 = vector.broadcast %cst_7 : f32 to vector<256x128xf32>
    %12 = arith.mulf %8, %11 : vector<256x128xf32>
    %13 = math.erf %12 : vector<256x128xf32>
    %cst_8 = arith.constant 1.000000e+00 : f32
    %14 = vector.broadcast %cst_8 : f32 to vector<256x128xf32>
    %15 = arith.addf %14, %13 : vector<256x128xf32>
    %16 = arith.mulf %10, %15 : vector<256x128xf32>
    %c0_9 = arith.constant 0 : index
    %c0_10 = arith.constant 0 : index
    %17 = vector.load %arg8[%c0_9, %c0_10] : memref<256x128xf32, #tpu.memory_space<vmem>>, vector<256x128xf32>
    %c0_11 = arith.constant 0 : index
    %c0_12 = arith.constant 0 : index
    %18 = vector.load %arg6[%c0_11, %c0_12] : memref<128x128xf32, #tpu.memory_space<vmem>>, vector<128x128xf32>
    %cst_13 = arith.constant dense<0.000000e+00> : vector<256x128xf32>
    %19 = tpu.matmul %16, %18, %cst_13 {dimension_numbers = #tpu.dot_dimension_numbers<[1], [0], [0], [1], [0, 0, 1, 1], [], []>} : vector<256x128xf32>, vector<128x128xf32>, vector<256x128xf32> -> vector<256x128xf32>
    %20 = arith.addf %17, %19 : vector<256x128xf32>
    %c0_14 = arith.constant 0 : index
    %c0_15 = arith.constant 0 : index
    %21 = vector.load %arg8[%c0_14, %c0_15] : memref<256x128xf32, #tpu.memory_space<vmem>>, vector<256x128xf32>
    tpu.vector_store %arg8[%c0_14, %c0_15], %20 {strides = array<i32>} : memref<256x128xf32, #tpu.memory_space<vmem>>, vector<256x128xf32>,
    %c0_i32_16 = arith.constant 0 : i32
    %22 = arith.cmpi eq, %arg2, %c0_i32_16 : i32
    %23 = arith.extui %22 : i1 to i32
    %c0_i32_17 = arith.constant 0 : i32
    %24 = arith.cmpi ne, %23, %c0_i32_17 : i32
    scf.if %24 {
      %c0_18 = arith.constant 0 : index
      %c0_19 = arith.constant 0 : index
      %25 = vector.load %arg8[%c0_18, %c0_19] : memref<256x128xf32, #tpu.memory_space<vmem>>, vector<256x128xf32>
      %c0_20 = arith.constant 0 : index
      %c0_21 = arith.constant 0 : index
      %26 = vector.load %arg7[%c0_20, %c0_21] : memref<1x128xf32, #tpu.memory_space<vmem>>, vector<1x128xf32>
      %27 = vector.broadcast %26 : vector<1x128xf32> to vector<256x128xf32>
      %28 = arith.addf %25, %27 : vector<256x128xf32>
      %c0_22 = arith.constant 0 : index
      %c0_23 = arith.constant 0 : index
      %29 = vector.load %arg8[%c0_22, %c0_23] : memref<256x128xf32, #tpu.memory_space<vmem>>, vector<256x128xf32>
      tpu.vector_store %arg8[%c0_22, %c0_23], %28 {strides = array<i32>} : memref<256x128xf32, #tpu.memory_space<vmem>>, vector<256x128xf32>,
    } else {
    }
    return
  }
  func.func @transform_0(%arg0: i32, %arg1: i32, %arg2: i32) -> (i32, i32) {
    %c0_i32 = arith.constant 0 : i32
    %c0_i32_0 = arith.constant 0 : i32
    return %arg0, %c0_i32 : i32, i32
  }
  func.func @transform_1(%arg0: i32, %arg1: i32, %arg2: i32) -> (i32, i32) {
    %c0_i32 = arith.constant 0 : i32
    %c0_i32_0 = arith.constant 0 : i32
    return %c0_i32, %arg2 : i32, i32
  }
  func.func @transform_2(%arg0: i32, %arg1: i32, %arg2: i32) -> (i32, i32) {
    %c0_i32 = arith.constant 0 : i32
    %c0_i32_0 = arith.constant 0 : i32
    return %c0_i32, %arg2 : i32, i32
  }
  func.func @transform_3(%arg0: i32, %arg1: i32, %arg2: i32) -> (i32, i32) {
    %c0_i32 = arith.constant 0 : i32
    return %arg2, %arg1 : i32, i32
  }
  func.func @transform_4(%arg0: i32, %arg1: i32, %arg2: i32) -> (i32, i32) {
    %c0_i32 = arith.constant 0 : i32
    %c0_i32_0 = arith.constant 0 : i32
    return %c0_i32, %arg1 : i32, i32
  }
  func.func @transform_5(%arg0: i32, %arg1: i32, %arg2: i32) -> (i32, i32) {
    %c0_i32 = arith.constant 0 : i32
    return %arg0, %arg1 : i32, i32
  }
}

</mosaic_0001>

<llo_original>
// kernel: tpu_custom_call.1
$region0: #{tpu_custom_call.1}
  #allocation0 [shape = 'u32[]', space=smem, size = 0x4, offset = 0x4, fixed_abs, tag = 'smem constant byte address 0x4 - core index']
  #allocation1 [shape = 'u32[72,128]{1,0:T(1,128)}', space=vmem, size = 0x9000, scoped, tag = 'internal scratch']
  %s0 = inlined_call_operand.hbm [shape: f32[512,128], index: 0, kind: input, shape index: {}]
  %s1 = inlined_call_operand.hbm [shape: f32[128,128], index: 1, kind: input, shape index: {}]
  %s2 = inlined_call_operand.vmem [shape: f32[1,128], index: 2, kind: input, shape index: {}]
  %s3 = inlined_call_operand.hbm [shape: f32[128,128], index: 3, kind: input, shape index: {}]
  %s4 = inlined_call_operand.vmem [shape: f32[1,128], index: 4, kind: input, shape index: {}]
  %s5 = inlined_call_operand.hbm [shape: f32[512,128], index: 5, kind: output, shape index: {}]
  %s6 = sld [smem:[#allocation0]]
  $region73: #{tpu_custom_call.1} parent=0
    _
  %s8 = ssub.s32 1, %s6
  %s9 = scalar_select 0, %s8, %s6
  $region1: #{tpu_custom_call.1} parent=0
    #allocation2 [shape = 'u8[262144]{0}', space=vmem, size = 0x40000, scoped, tag = 'input window, operand 0']
    #allocation3 [shape = 's32[2]{0}', space=sflag, size = 0x8, scoped, tag = 'scoped memory for tpu_custom_call.1']
    #allocation4 [shape = 's32[2]{0}', space=sflag, size = 0x8, scoped, tag = 'scoped memory for tpu_custom_call.1']
    #allocation5 [shape = 'u8[65536]{0}', space=vmem, size = 0x10000, scoped, tag = 'input window, operand 1, single buffered']
    #allocation6 [shape = 's32[1]{0}', space=sflag, size = 0x4, scoped, tag = 'scoped memory for tpu_custom_call.1']
    #allocation7 [shape = 'u8[65536]{0}', space=vmem, size = 0x10000, scoped, tag = 'input window, operand 3, single buffered']
    #allocation8 [shape = 'u8[262144]{0}', space=vmem, size = 0x40000, scoped, tag = 'output window, operand 0']
    %10 = vsyncpa [#allocation3], 0
    %s11 = scalar_lea.sflag [#allocation3], 1
    %12 = vsyncpa %s11, 0
    %13 = vsyncpa [#allocation6], 0
    %14 = vsyncpa [#allocation4], 0
    %s15 = scalar_lea.sflag [#allocation4], 1
    %16 = vsyncpa %s15, 0
    loop: start=0, step=1, limit=4
    $region2: #{tpu_custom_call.1} parent=1 // loop_pre_header
      _
    $region3: #{tpu_custom_call.1} parent=1 // loop_header
      %s18 = sphi 0, %s22
      %p19 = scmp.ge.s32.totalorder %s18, 4
      %s25 = sphi 0, %s44
      %s26 = sphi 0, %s40
      %s27 = sphi 0, %s36
      %s28 = sphi 0, %s25
      %s29 = sphi 0, %s26
      %s30 = sphi 0, %s27
      %s31 = sphi 0, %s28
      %s32 = sphi 0, %s29
      %s33 = sphi 0, %s30
      %s47 = sphi 0, %s49
      %s50 = sphi 0, %s47
      %s51 = sphi 0, %s50
      %s67 = sphi 0, %s51
      %s73 = sphi 0, %s75
      %s76 = sphi 0, %s73
      %s77 = sphi 0, %s76
      %s93 = sphi 0, %s77
      %s99 = sphi 0, %s101
      %s102 = sphi 0, %s99
      %s103 = sphi 0, %s102
      %s119 = sphi 0, %s103
      %s127 = sphi 0, %s129
      %s130 = sphi 0, %s127
      %s131 = sphi 0, %s130
      %s147 = sphi 0, %s131
      %s153 = sphi 0, %s155
      %s156 = sphi 0, %s153
      %s157 = sphi 0, %s156
      %s173 = sphi 0, %s157
      %s181 = sphi 0, %s183
      %s184 = sphi 0, %s181
      %s185 = sphi 0, %s184
      %s201 = sphi 0, %s185
    $region4: #{tpu_custom_call.1} parent=1 // loop_header_branch
      %21 = sbr.rel (%p19) target = $region8
    $region5: #{tpu_custom_call.1} parent=1 // loop_body
      %s23 = ssub.s32 %s18, 1
      %s24 = ssub.s32 %s18, 2
      %s34 = sadd.s32 1, %s27
      %p35 = scmp.ge.s32.totalorder %s34, 1
      %s36 = scalar_select %p35, 0, %s34
      %s37 = sadd.s32 1, %s26
      %s38 = scalar_select %p35, %s37, %s26
      %p39 = scmp.ge.s32.totalorder %s38, 1
      %s40 = scalar_select %p39, 0, %s38
      %s41 = sadd.s32 1, %s25
      %s42 = scalar_select %p39, %s41, %s25
      %p43 = scmp.ge.s32.totalorder %s42, 2
      %s44 = scalar_select %p43, 0, %s42
      %s45 = ssub.s32 %s25, %s44
      %p46 = scmp.eq.s32.totalorder %s45, 0
      %s48 = sadd.s32 %s47, 1
      %s49 = scalar_select %p46, %s47, %s48
      %p52 = pneg %p46
      %p53 = scmp.eq.s32.totalorder %s18, 1
      %p54 = por %p52, %p53
      %p55 = scmp.ne.s32.totalorder %s47, %s50
      %p56 = scmp.eq.s32.totalorder %s18, 0
      %p57 = por %p55, %p56
      %p58 = scmp.ne.s32.totalorder %s47, %s50
      %p59 = scmp.eq.s32.totalorder %s23, 1
      %p60 = por %p58, %p59
      %p61 = scmp.ne.s32.totalorder %s50, %s51
      %p62 = scmp.eq.s32.totalorder %s23, 0
      %p63 = por %p61, %p62
      %p64 = scmp.ne.s32.totalorder %s50, %s51
      %p65 = scmp.eq.s32.totalorder %s24, 1
      %p66 = por %p64, %p65
      %p68 = scmp.ne.s32.totalorder %s51, %s67
      %p69 = scmp.eq.s32.totalorder %s24, 0
      %p70 = por %p68, %p69
      %s71 = ssub.s32 %s27, %s36
      %p72 = scmp.eq.s32.totalorder %s71, 0
      %s74 = sadd.s32 %s73, 1
      %s75 = scalar_select %p72, %s73, %s74
      %p78 = pneg %p72
      %p79 = scmp.eq.s32.totalorder %s18, 1
      %p80 = por %p78, %p79
      %p81 = scmp.ne.s32.totalorder %s73, %s76
      %p82 = scmp.eq.s32.totalorder %s18, 0
      %p83 = por %p81, %p82
      %p84 = scmp.ne.s32.totalorder %s73, %s76
      %p85 = scmp.eq.s32.totalorder %s23, 1
      %p86 = por %p84, %p85
      %p87 = scmp.ne.s32.totalorder %s76, %s77
      %p88 = scmp.eq.s32.totalorder %s23, 0
      %p89 = por %p87, %p88
      %p90 = scmp.ne.s32.totalorder %s76, %s77
      %p91 = scmp.eq.s32.totalorder %s24, 1
      %p92 = por %p90, %p91
      %p94 = scmp.ne.s32.totalorder %s77, %s93
      %p95 = scmp.eq.s32.totalorder %s24, 0
      %p96 = por %p94, %p95
      %s97 = ssub.s32 %s27, %s36
      %p98 = scmp.eq.s32.totalorder %s97, 0
      %s100 = sadd.s32 %s99, 1
      %s101 = scalar_select %p98, %s99, %s100
      %p104 = pneg %p98
      %p105 = scmp.eq.s32.totalorder %s18, 1
      %p106 = por %p104, %p105
      %p107 = scmp.ne.s32.totalorder %s99, %s102
      %p108 = scmp.eq.s32.totalorder %s18, 0
      %p109 = por %p107, %p108
      %p110 = scmp.ne.s32.totalorder %s99, %s102
      %p111 = scmp.eq.s32.totalorder %s23, 1
      %p112 = por %p110, %p111
      %p113 = scmp.ne.s32.totalorder %s102, %s103
      %p114 = scmp.eq.s32.totalorder %s23, 0
      %p115 = por %p113, %p114
      %p116 = scmp.ne.s32.totalorder %s102, %s103
      %p117 = scmp.eq.s32.totalorder %s24, 1
      %p118 = por %p116, %p117
      %p120 = scmp.ne.s32.totalorder %s103, %s119
      %p121 = scmp.eq.s32.totalorder %s24, 0
      %p122 = por %p120, %p121
      %s123 = ssub.s32 %s27, %s36
      %s124 = ssub.s32 %s26, %s40
      %s125 = sor.u32 %s123, %s124
      %p126 = scmp.eq.s32.totalorder %s125, 0
      %s128 = sadd.s32 %s127, 1
      %s129 = scalar_select %p126, %s127, %s128
      %p132 = pneg %p126
      %p133 = scmp.eq.s32.totalorder %s18, 1
      %p134 = por %p132, %p133
      %p135 = scmp.ne.s32.totalorder %s127, %s130
      %p136 = scmp.eq.s32.totalorder %s18, 0
      %p137 = por %p135, %p136
      %p138 = scmp.ne.s32.totalorder %s127, %s130
      %p139 = scmp.eq.s32.totalorder %s23, 1
      %p140 = por %p138, %p139
      %p141 = scmp.ne.s32.totalorder %s130, %s131
      %p142 = scmp.eq.s32.totalorder %s23, 0
      %p143 = por %p141, %p142
      %p144 = scmp.ne.s32.totalorder %s130, %s131
      %p145 = scmp.eq.s32.totalorder %s24, 1
      %p146 = por %p144, %p145
      %p148 = scmp.ne.s32.totalorder %s131, %s147
      %p149 = scmp.eq.s32.totalorder %s24, 0
      %p150 = por %p148, %p149
      %s151 = ssub.s32 %s26, %s40
      %p152 = scmp.eq.s32.totalorder %s151, 0
      %s154 = sadd.s32 %s153, 1
      %s155 = scalar_select %p152, %s153, %s154
      %p158 = pneg %p152
      %p159 = scmp.eq.s32.totalorder %s18, 1
      %p160 = por %p158, %p159
      %p161 = scmp.ne.s32.totalorder %s153, %s156
      %p162 = scmp.eq.s32.totalorder %s18, 0
      %p163 = por %p161, %p162
      %p164 = scmp.ne.s32.totalorder %s153, %s156
      %p165 = scmp.eq.s32.totalorder %s23, 1
      %p166 = por %p164, %p165
      %p167 = scmp.ne.s32.totalorder %s156, %s157
      %p168 = scmp.eq.s32.totalorder %s23, 0
      %p169 = por %p167, %p168
      %p170 = scmp.ne.s32.totalorder %s156, %s157
      %p171 = scmp.eq.s32.totalorder %s24, 1
      %p172 = por %p170, %p171
      %p174 = scmp.ne.s32.totalorder %s157, %s173
      %p175 = scmp.eq.s32.totalorder %s24, 0
      %p176 = por %p174, %p175
      %s177 = ssub.s32 %s25, %s44
      %s178 = ssub.s32 %s26, %s40
      %s179 = sor.u32 %s177, %s178
      %p180 = scmp.eq.s32.totalorder %s179, 0
      %s182 = sadd.s32 %s181, 1
      %s183 = scalar_select %p180, %s181, %s182
      %p186 = pneg %p180
      %p187 = scmp.eq.s32.totalorder %s18, 1
      %p188 = por %p186, %p187
      %p189 = scmp.ne.s32.totalorder %s181, %s184
      %p190 = scmp.eq.s32.totalorder %s18, 0
      %p191 = por %p189, %p190
      %p192 = scmp.ne.s32.totalorder %s181, %s184
      %p193 = scmp.eq.s32.totalorder %s23, 1
      %p194 = por %p192, %p193
      %p195 = scmp.ne.s32.totalorder %s184, %s185
      %p196 = scmp.eq.s32.totalorder %s23, 0
      %p197 = por %p195, %p196
      %p198 = scmp.ne.s32.totalorder %s184, %s185
      %p199 = scmp.eq.s32.totalorder %s24, 1
      %p200 = por %p198, %p199
      %p202 = scmp.ne.s32.totalorder %s185, %s201
      %p203 = scmp.eq.s32.totalorder %s24, 0
      %p204 = por %p202, %p203
      %p205 = scmp.le.s32.totalorder 1, %s18
      %p206 = scmp.lt.s32.totalorder %s18, 3
      %p207 = pnand %p205, %p206
      %p208 = pneg %p207
      // Predicated region
      $region9: #{tpu_custom_call.1} parent=5 // pred_check
        _
      $region10: #{tpu_custom_call.1} parent=5 // pred_check_branch
        %210 = sbr.rel (%p207) target = $region12
      $region11: #{tpu_custom_call.1} parent=5 // pred_region
        %s211 = ssub.s32 %s18, 1
        // Predicated region
        $region13: #{tpu_custom_call.1} parent=11 // pred_check
          %p212 = pneg %p89
        $region14: #{tpu_custom_call.1} parent=11 // pred_check_branch
          %214 = sbr.rel (%p212) target = $region16
        $region15: #{tpu_custom_call.1} parent=11 // pred_region
          %216 = vsyncadd [#allocation6], 0
          %s217 = smul.addr %s30, 8
          %s218 = scalar_lea.hbm %s1, %s217
          %s219 = sshll.u32 %s218, 4
          %s220 = int_to_ptr.hbm [resolvable:$true] %s219
          %s221 = sshll.u32 [#allocation5], 4
          %s222 = int_to_ptr.vmem [resolvable:$true] %s221
          %227 = dma.hbm_to_vmem [thread:$0]  %s220, 2048, %s222, [#allocation6], 128, 128, 8
        $region16: #{tpu_custom_call.1} parent=11 // pred_fallthru
          _
        // Predicated region
        $region17: #{tpu_custom_call.1} parent=11 // pred_check
          %p228 = pneg %p115
        $region18: #{tpu_custom_call.1} parent=11 // pred_check_branch
          %230 = sbr.rel (%p228) target = $region20
        $region19: #{tpu_custom_call.1} parent=11 // pred_region
          %p231 = scmp.lt.s32.totalorder %s30, 0
          %s232 = scalar_select %p231, %s30, 0
          %s233 = scalar_lea.vmem %s2, %s232
        $region20: #{tpu_custom_call.1} parent=11 // pred_fallthru
          _
        // Predicated region
        $region21: #{tpu_custom_call.1} parent=11 // pred_check
          %p234 = pneg %p143
        $region22: #{tpu_custom_call.1} parent=11 // pred_check_branch
          %236 = sbr.rel (%p234) target = $region24
        $region23: #{tpu_custom_call.1} parent=11 // pred_region
          %s237 = smul.u32 16, %s30
          %239 = vsyncadd [#allocation6], 0
          %s240 = sadd.s32 %s29, %s237
          %s241 = smul.addr %s240, 8
          %s242 = scalar_lea.hbm %s3, %s241
          %s243 = sshll.u32 %s242, 4
          %s244 = int_to_ptr.hbm [resolvable:$true] %s243
          %s245 = sshll.u32 [#allocation7], 4
          %s246 = int_to_ptr.vmem [resolvable:$true] %s245
          %251 = dma.hbm_to_vmem [thread:$0]  %s244, 2048, %s246, [#allocation6], 128, 128, 8
        $region24: #{tpu_custom_call.1} parent=11 // pred_fallthru
          _
        // Predicated region
        $region25: #{tpu_custom_call.1} parent=11 // pred_check
          %p252 = pneg %p169
        $region26: #{tpu_custom_call.1} parent=11 // pred_check_branch
          %254 = sbr.rel (%p252) target = $region28
        $region27: #{tpu_custom_call.1} parent=11 // pred_region
          %p255 = scmp.lt.s32.totalorder %s29, 0
          %s256 = scalar_select %p255, %s29, 0
          %s257 = scalar_lea.vmem %s4, %s256
        $region28: #{tpu_custom_call.1} parent=11 // pred_fallthru
          _
      $region12: #{tpu_custom_call.1} parent=5 // pred_fallthru
        _
      %p258 = scmp.lt.s32.totalorder %s18, 2
      // Predicated region
      $region29: #{tpu_custom_call.1} parent=5 // pred_check
        %p259 = pneg %p258
      $region30: #{tpu_custom_call.1} parent=5 // pred_check_branch
        %261 = sbr.rel (%p259) target = $region32
      $region31: #{tpu_custom_call.1} parent=5 // pred_region
        // Predicated region
        $region33: #{tpu_custom_call.1} parent=31 // pred_check
          %p262 = pneg %p57
        $region34: #{tpu_custom_call.1} parent=31 // pred_check_branch
          %264 = sbr.rel (%p262) target = $region36
        $region35: #{tpu_custom_call.1} parent=31 // pred_region
          %s265 = sand.u32 %s47, 1
          %s266 = scalar_lea.sflag [#allocation3], %s265
          %s267 = sand.u32 %s47, 1
          %s268 = smul.addr %s267, 256
          %s269 = scalar_lea.vmem [#allocation2], %s268
          %s270 = smul.u32 32, %s25
          %272 = vsyncadd %s266, 0
          %s273 = smul.addr %s270, 8
          %s274 = scalar_lea.hbm %s0, %s273
          %s275 = sshll.u32 %s274, 4
          %s276 = int_to_ptr.hbm [resolvable:$true] %s275
          %s277 = sshll.u32 %s269, 4
          %s278 = int_to_ptr.vmem [resolvable:$true] %s277
          %283 = dma.hbm_to_vmem [thread:$0]  %s276, 4096, %s278, %s266, 128, 128, 8
        $region36: #{tpu_custom_call.1} parent=31 // pred_fallthru
          _
      $region32: #{tpu_custom_call.1} parent=5 // pred_fallthru
        _
      %p284 = scmp.le.s32.totalorder 1, %s18
      %p285 = scmp.lt.s32.totalorder %s18, 3
      %p286 = pnand %p284, %p285
      %p287 = pneg %p286
      // Predicated region
      $region37: #{tpu_custom_call.1} parent=5 // pred_check
        _
      $region38: #{tpu_custom_call.1} parent=5 // pred_check_branch
        %289 = sbr.rel (%p286) target = $region40
      $region39: #{tpu_custom_call.1} parent=5 // pred_region
        %s290 = ssub.s32 %s18, 1
        %s291 = sand.u32 %s50, 1
        %s292 = scalar_lea.sflag [#allocation3], %s291
        %s293 = sand.u32 %s50, 1
        %s294 = smul.addr %s293, 256
        %s295 = scalar_lea.vmem [#allocation2], %s294
        // Predicated region
        $region41: #{tpu_custom_call.1} parent=39 // pred_check
          %p296 = pneg %p63
        $region42: #{tpu_custom_call.1} parent=39 // pred_check_branch
          %298 = sbr.rel (%p296) target = $region44
        $region43: #{tpu_custom_call.1} parent=39 // pred_region
          %300 = dma.done %s292, 4096
        $region44: #{tpu_custom_call.1} parent=39 // pred_fallthru
          _
        // Predicated region
        $region45: #{tpu_custom_call.1} parent=39 // pred_check
          %p301 = pneg %p89
        $region46: #{tpu_custom_call.1} parent=39 // pred_check_branch
          %303 = sbr.rel (%p301) target = $region48
        $region47: #{tpu_custom_call.1} parent=39 // pred_region
          %305 = dma.done [#allocation6], 2048
        $region48: #{tpu_custom_call.1} parent=39 // pred_fallthru
          _
        // Predicated region
        $region49: #{tpu_custom_call.1} parent=39 // pred_check
          %p306 = pneg %p143
        $region50: #{tpu_custom_call.1} parent=39 // pred_check_branch
          %308 = sbr.rel (%p306) target = $region52
        $region51: #{tpu_custom_call.1} parent=39 // pred_region
          %310 = dma.done [#allocation6], 2048
        $region52: #{tpu_custom_call.1} parent=39 // pred_fallthru
          _
        %s311 = sand.u32 %s50, 1
        %s312 = scalar_lea.sflag [#allocation3], %s311
        %s313 = sand.u32 %s50, 1
        %s314 = smul.addr %s313, 256
        %s315 = scalar_lea.vmem [#allocation2], %s314
        %p316 = pneg %p63
        %p317 = pneg %p60
        %p318 = pneg %p89
        %p319 = pneg %p86
        %p320 = scmp.lt.s32.totalorder %s30, 0
        %s321 = scalar_select %p320, %s30, 0
        %s322 = scalar_lea.vmem %s2, %s321
        %p323 = pneg %p115
        %p324 = pneg %p112
        %p325 = pneg %p143
        %p326 = pneg %p140
        %p327 = scmp.lt.s32.totalorder %s29, 0
        %s328 = scalar_select %p327, %s29, 0
        %s329 = scalar_lea.vmem %s4, %s328
        %p330 = pneg %p169
        %p331 = pneg %p166
        %p332 = pneg %p197
        %p333 = pneg %p194
        %s334 = sand.u32 %s184, 1
        %s335 = scalar_lea.sflag [#allocation4], %s334
        %s336 = sand.u32 %s184, 1
        %s337 = smul.addr %s336, 256
        %s338 = scalar_lea.vmem [#allocation8], %s337
        %s339 = smul.u32 32, %s28
        %p340 = scmp.lt.s32.totalorder %s30, 0
        %s341 = scalar_select %p340, %s30, 0
        %s342 = scalar_lea.vmem %s2, %s341
        %s343 = smul.u32 16, %s30
        %p344 = scmp.lt.s32.totalorder %s29, 0
        %s345 = scalar_select %p344, %s29, 0
        %s346 = scalar_lea.vmem %s4, %s345
        %s347 = smul.u32 32, %s28
        %p348 = scmp.eq.s32.totalorder %s30, 0
        // Predicated region
        $region53: #{tpu_custom_call.1} parent=39 // pred_check
          %p349 = pneg %p348
        $region54: #{tpu_custom_call.1} parent=39 // pred_check_branch
          %351 = sbr.rel (%p349) target = $region56
        $region55: #{tpu_custom_call.1} parent=39 // pred_region
          %352 = vst [vmem:[%s338] sm:$0xff] 0.0
          %353 = vst [vmem:[%s338 + $0x8] sm:$0xff] 0.0
          %354 = vst [vmem:[%s338 + $0x10] sm:$0xff] 0.0
          %355 = vst [vmem:[%s338 + $0x18] sm:$0xff] 0.0
          %356 = vst [vmem:[%s338 + $0x20] sm:$0xff] 0.0
          %357 = vst [vmem:[%s338 + $0x28] sm:$0xff] 0.0
          %358 = vst [vmem:[%s338 + $0x30] sm:$0xff] 0.0
          %359 = vst [vmem:[%s338 + $0x38] sm:$0xff] 0.0
          %360 = vst [vmem:[%s338 + $0x40] sm:$0xff] 0.0
          %361 = vst [vmem:[%s338 + $0x48] sm:$0xff] 0.0
          %362 = vst [vmem:[%s338 + $0x50] sm:$0xff] 0.0
          %363 = vst [vmem:[%s338 + $0x58] sm:$0xff] 0.0
          %364 = vst [vmem:[%s338 + $0x60] sm:$0xff] 0.0
          %365 = vst [vmem:[%s338 + $0x68] sm:$0xff] 0.0
          %366 = vst [vmem:[%s338 + $0x70] sm:$0xff] 0.0
          %367 = vst [vmem:[%s338 + $0x78] sm:$0xff] 0.0
          %368 = vst [vmem:[%s338 + $0x80] sm:$0xff] 0.0
          %369 = vst [vmem:[%s338 + $0x88] sm:$0xff] 0.0
          %370 = vst [vmem:[%s338 + $0x90] sm:$0xff] 0.0
          %371 = vst [vmem:[%s338 + $0x98] sm:$0xff] 0.0
          %372 = vst [vmem:[%s338 + $0xa0] sm:$0xff] 0.0
          %373 = vst [vmem:[%s338 + $0xa8] sm:$0xff] 0.0
          %374 = vst [vmem:[%s338 + $0xb0] sm:$0xff] 0.0
          %375 = vst [vmem:[%s338 + $0xb8] sm:$0xff] 0.0
          %376 = vst [vmem:[%s338 + $0xc0] sm:$0xff] 0.0
          %377 = vst [vmem:[%s338 + $0xc8] sm:$0xff] 0.0
          %378 = vst [vmem:[%s338 + $0xd0] sm:$0xff] 0.0
          %379 = vst [vmem:[%s338 + $0xd8] sm:$0xff] 0.0
          %380 = vst [vmem:[%s338 + $0xe0] sm:$0xff] 0.0
          %381 = vst [vmem:[%s338 + $0xe8] sm:$0xff] 0.0
          %382 = vst [vmem:[%s338 + $0xf0] sm:$0xff] 0.0
          %383 = vst [vmem:[%s338 + $0xf8] sm:$0xff] 0.0
        $region56: #{tpu_custom_call.1} parent=39 // pred_fallthru
          _
        %v384 = vld [vmem:[%s295] sm:$0xff]
        %v385 = vld [vmem:[%s295 + $0x8] sm:$0xff]
        %v386 = vld [vmem:[%s295 + $0x10] sm:$0xff]
        %v387 = vld [vmem:[%s295 + $0x18] sm:$0xff]
        %v388 = vld [vmem:[%s295 + $0x20] sm:$0xff]
        %v389 = vld [vmem:[%s295 + $0x28] sm:$0xff]
        %v390 = vld [vmem:[%s295 + $0x30] sm:$0xff]
        %v391 = vld [vmem:[%s295 + $0x38] sm:$0xff]
        %v392 = vld [vmem:[%s295 + $0x40] sm:$0xff]
        %v393 = vld [vmem:[%s295 + $0x48] sm:$0xff]
        %v394 = vld [vmem:[%s295 + $0x50] sm:$0xff]
        %v395 = vld [vmem:[%s295 + $0x58] sm:$0xff]
        %v396 = vld [vmem:[%s295 + $0x60] sm:$0xff]
        %v397 = vld [vmem:[%s295 + $0x68] sm:$0xff]
        %v398 = vld [vmem:[%s295 + $0x70] sm:$0xff]
        %v399 = vld [vmem:[%s295 + $0x78] sm:$0xff]
        %v400 = vld [vmem:[%s295 + $0x80] sm:$0xff]
        %v401 = vld [vmem:[%s295 + $0x88] sm:$0xff]
        %v402 = vld [vmem:[%s295 + $0x90] sm:$0xff]
        %v403 = vld [vmem:[%s295 + $0x98] sm:$0xff]
        %v404 = vld [vmem:[%s295 + $0xa0] sm:$0xff]
        %v405 = vld [vmem:[%s295 + $0xa8] sm:$0xff]
        %v406 = vld [vmem:[%s295 + $0xb0] sm:$0xff]
        %v407 = vld [vmem:[%s295 + $0xb8] sm:$0xff]
        %v408 = vld [vmem:[%s295 + $0xc0] sm:$0xff]
        %v409 = vld [vmem:[%s295 + $0xc8] sm:$0xff]
        %v410 = vld [vmem:[%s295 + $0xd0] sm:$0xff]
        %v411 = vld [vmem:[%s295 + $0xd8] sm:$0xff]
        %v412 = vld [vmem:[%s295 + $0xe0] sm:$0xff]
        %v413 = vld [vmem:[%s295 + $0xe8] sm:$0xff]
        %v414 = vld [vmem:[%s295 + $0xf0] sm:$0xff]
        %v415 = vld [vmem:[%s295 + $0xf8] sm:$0xff]
        %v416 = vld [vmem:[#allocation5] sm:$0xff]
        %v417 = vld [vmem:[#allocation5 + $0x8] sm:$0xff]
        %v418 = vld [vmem:[#allocation5 + $0x10] sm:$0xff]
        %v419 = vld [vmem:[#allocation5 + $0x18] sm:$0xff]
        %v420 = vld [vmem:[#allocation5 + $0x20] sm:$0xff]
        %v421 = vld [vmem:[#allocation5 + $0x28] sm:$0xff]
        %v422 = vld [vmem:[#allocation5 + $0x30] sm:$0xff]
        %v423 = vld [vmem:[#allocation5 + $0x38] sm:$0xff]
        %v424 = vld [vmem:[#allocation5 + $0x40] sm:$0xff]
        %v425 = vld [vmem:[#allocation5 + $0x48] sm:$0xff]
        %v426 = vld [vmem:[#allocation5 + $0x50] sm:$0xff]
        %v427 = vld [vmem:[#allocation5 + $0x58] sm:$0xff]
        %v428 = vld [vmem:[#allocation5 + $0x60] sm:$0xff]
        %v429 = vld [vmem:[#allocation5 + $0x68] sm:$0xff]
        %v430 = vld [vmem:[#allocation5 + $0x70] sm:$0xff]
        %v431 = vld [vmem:[#allocation5 + $0x78] sm:$0xff]
        %v432 = vld [vmem:[%s342] sm:$0x1]
        %v434 = vperm.slane %v432, 0
        %436 = vmatpush.msra.mxu0 %v431
        %437 = vmatpush.msra.mxu0 %v430
        %438 = vmatpush.msra.mxu0 %v429
        %439 = vmatpush.msra.mxu0 %v428
        %440 = vmatpush.msra.mxu0 %v427
        %441 = vmatpush.msra.mxu0 %v426
        %442 = vmatpush.msra.mxu0 %v425
        %443 = vmatpush.msra.mxu0 %v424
        %444 = vmatpush.msra.mxu0 %v423
        %445 = vmatpush.msra.mxu0 %v422
        %446 = vmatpush.msra.mxu0 %v421
        %447 = vmatpush.msra.mxu0 %v420
        %448 = vmatpush.msra.mxu0 %v419
        %449 = vmatpush.msra.mxu0 %v418
        %450 = vmatpush.msra.mxu0 %v417
        %451 = vmatpush.msra.mxu0 %v416
        %452 = vmatmul.f32.gmra.mxu0 %v384
        %v453 = vpop.f32.mrf.mxu0
        %v454 = vadd.f32 %v434, %v453
        %455 = vmatmul.f32.gmra.mxu0 %v385
        %v456 = vpop.f32.mrf.mxu0
        %v457 = vadd.f32 %v434, %v456
        %458 = vmatmul.f32.gmra.mxu0 %v386
        %v459 = vpop.f32.mrf.mxu0
        %v460 = vadd.f32 %v434, %v459
        %461 = vmatmul.f32.gmra.mxu0 %v387
        %v462 = vpop.f32.mrf.mxu0
        %v463 = vadd.f32 %v434, %v462
        %464 = vmatmul.f32.gmra.mxu0 %v388
        %v465 = vpop.f32.mrf.mxu0
        %v466 = vadd.f32 %v434, %v465
        %467 = vmatmul.f32.gmra.mxu0 %v389
        %v468 = vpop.f32.mrf.mxu0
        %v469 = vadd.f32 %v434, %v468
        %470 = vmatmul.f32.gmra.mxu0 %v390
        %v471 = vpop.f32.mrf.mxu0
        %v472 = vadd.f32 %v434, %v471
        %473 = vmatmul.f32.gmra.mxu0 %v391
        %v474 = vpop.f32.mrf.mxu0
        %v475 = vadd.f32 %v434, %v474
        %476 = vmatmul.f32.gmra.mxu0 %v392
        %v477 = vpop.f32.mrf.mxu0
        %v478 = vadd.f32 %v434, %v477
        %479 = vmatmul.f32.gmra.mxu0 %v393
        %v480 = vpop.f32.mrf.mxu0
        %v481 = vadd.f32 %v434, %v480
        %482 = vmatmul.f32.gmra.mxu0 %v394
        %v483 = vpop.f32.mrf.mxu0
        %v484 = vadd.f32 %v434, %v483
        %485 = vmatmul.f32.gmra.mxu0 %v395
        %v486 = vpop.f32.mrf.mxu0
        %v487 = vadd.f32 %v434, %v486
        %488 = vmatmul.f32.gmra.mxu0 %v396
        %v489 = vpop.f32.mrf.mxu0
        %v490 = vadd.f32 %v434, %v489
        %491 = vmatmul.f32.gmra.mxu0 %v397
        %v492 = vpop.f32.mrf.mxu0
        %v493 = vadd.f32 %v434, %v492
        %494 = vmatmul.f32.gmra.mxu0 %v398
        %v495 = vpop.f32.mrf.mxu0
        %v496 = vadd.f32 %v434, %v495
        %497 = vmatmul.f32.gmra.mxu0 %v399
        %v498 = vpop.f32.mrf.mxu0
        %v499 = vadd.f32 %v434, %v498
        %500 = vmatmul.f32.gmra.mxu0 %v400
        %v501 = vpop.f32.mrf.mxu0
        %v502 = vadd.f32 %v434, %v501
        %503 = vmatmul.f32.gmra.mxu0 %v401
        %v504 = vpop.f32.mrf.mxu0
        %v505 = vadd.f32 %v434, %v504
        %506 = vmatmul.f32.gmra.mxu0 %v402
        %v507 = vpop.f32.mrf.mxu0
        %v508 = vadd.f32 %v434, %v507
        %509 = vmatmul.f32.gmra.mxu0 %v403
        %v510 = vpop.f32.mrf.mxu0
        %v511 = vadd.f32 %v434, %v510
        %512 = vmatmul.f32.gmra.mxu0 %v404
        %v513 = vpop.f32.mrf.mxu0
        %v514 = vadd.f32 %v434, %v513
        %515 = vmatmul.f32.gmra.mxu0 %v405
        %v516 = vpop.f32.mrf.mxu0
        %v517 = vadd.f32 %v434, %v516
        %518 = vmatmul.f32.gmra.mxu0 %v406
        %v519 = vpop.f32.mrf.mxu0
        %v520 = vadd.f32 %v434, %v519
        %521 = vmatmul.f32.gmra.mxu0 %v407
        %v522 = vpop.f32.mrf.mxu0
        %v523 = vadd.f32 %v434, %v522
        %524 = vmatmul.f32.gmra.mxu0 %v408
        %v525 = vpop.f32.mrf.mxu0
        %v526 = vadd.f32 %v434, %v525
        %527 = vmatmul.f32.gmra.mxu0 %v409
        %v528 = vpop.f32.mrf.mxu0
        %v529 = vadd.f32 %v434, %v528
        %530 = vmatmul.f32.gmra.mxu0 %v410
        %v531 = vpop.f32.mrf.mxu0
        %v532 = vadd.f32 %v434, %v531
        %533 = vmatmul.f32.gmra.mxu0 %v411
        %v534 = vpop.f32.mrf.mxu0
        %v535 = vadd.f32 %v434, %v534
        %536 = vmatmul.f32.gmra.mxu0 %v412
        %v537 = vpop.f32.mrf.mxu0
        %v538 = vadd.f32 %v434, %v537
        %539 = vmatmul.f32.gmra.mxu0 %v413
        %v540 = vpop.f32.mrf.mxu0
        %v541 = vadd.f32 %v434, %v540
        %542 = vmatmul.f32.gmra.mxu0 %v414
        %v543 = vpop.f32.mrf.mxu0
        %v544 = vadd.f32 %v434, %v543
        %545 = vmatmul.f32.gmra.mxu0 %v415
        %v546 = vpop.f32.mrf.mxu0
        %v547 = vadd.f32 %v434, %v546
        %548 = vdwg.mxu0
        %v549 = vmul.f32 %v454, 0.5
        %v550 = vmul.f32 %v457, 0.5
        %v551 = vmul.f32 %v460, 0.5
        %v552 = vmul.f32 %v463, 0.5
        %v553 = vmul.f32 %v466, 0.5
        %v554 = vmul.f32 %v469, 0.5
        %v555 = vmul.f32 %v472, 0.5
        %v556 = vmul.f32 %v475, 0.5
        %v557 = vmul.f32 %v478, 0.5
        %v558 = vmul.f32 %v481, 0.5
        %v559 = vmul.f32 %v484, 0.5
        %v560 = vmul.f32 %v487, 0.5
        %v561 = vmul.f32 %v490, 0.5
        %v562 = vmul.f32 %v493, 0.5
        %v563 = vmul.f32 %v496, 0.5
        %v564 = vmul.f32 %v499, 0.5
        %v565 = vmul.f32 %v502, 0.5
        %v566 = vmul.f32 %v505, 0.5
        %v567 = vmul.f32 %v508, 0.5
        %v568 = vmul.f32 %v511, 0.5
        %v569 = vmul.f32 %v514, 0.5
        %v570 = vmul.f32 %v517, 0.5
        %v571 = vmul.f32 %v520, 0.5
        %v572 = vmul.f32 %v523, 0.5
        %v573 = vmul.f32 %v526, 0.5
        %v574 = vmul.f32 %v529, 0.5
        %v575 = vmul.f32 %v532, 0.5
        %v576 = vmul.f32 %v535, 0.5
        %v577 = vmul.f32 %v538, 0.5
        %v578 = vmul.f32 %v541, 0.5
        %v579 = vmul.f32 %v544, 0.5
        %v580 = vmul.f32 %v547, 0.5
        %v581 = vmul.f32 %v454, 0.70710677
        %v582 = vmul.f32 %v457, 0.70710677
        %v583 = vmul.f32 %v460, 0.70710677
        %v584 = vmul.f32 %v463, 0.70710677
        %v585 = vmul.f32 %v466, 0.70710677
        %v586 = vmul.f32 %v469, 0.70710677
        %v587 = vmul.f32 %v472, 0.70710677
        %v588 = vmul.f32 %v475, 0.70710677
        %v589 = vmul.f32 %v478, 0.70710677
        %v590 = vmul.f32 %v481, 0.70710677
        %v591 = vmul.f32 %v484, 0.70710677
        %v592 = vmul.f32 %v487, 0.70710677
        %v593 = vmul.f32 %v490, 0.70710677
        %v594 = vmul.f32 %v493, 0.70710677
        %v595 = vmul.f32 %v496, 0.70710677
        %v596 = vmul.f32 %v499, 0.70710677
        %v597 = vmul.f32 %v502, 0.70710677
        %v598 = vmul.f32 %v505, 0.70710677
        %v599 = vmul.f32 %v508, 0.70710677
        %v600 = vmul.f32 %v511, 0.70710677
        %v601 = vmul.f32 %v514, 0.70710677
        %v602 = vmul.f32 %v517, 0.70710677
        %v603 = vmul.f32 %v520, 0.70710677
        %v604 = vmul.f32 %v523, 0.70710677
        %v605 = vmul.f32 %v526, 0.70710677
        %v606 = vmul.f32 %v529, 0.70710677
        %v607 = vmul.f32 %v532, 0.70710677
        %v608 = vmul.f32 %v535, 0.70710677
        %v609 = vmul.f32 %v538, 0.70710677
        %v610 = vmul.f32 %v541, 0.70710677
        %v611 = vmul.f32 %v544, 0.70710677
        %v612 = vmul.f32 %v547, 0.70710677
        %v613 = vmul.f32 %v581, %v581
        %v614 = vmin.f32 16.0, %v613
        %v615 = vmul.f32 %v614, 2.1237322e-06
        %v616 = vadd.f32 %v615, 0.00028619796
        %v617 = vmul.f32 %v614, %v616
        %v618 = vadd.f32 %v617, 0.0036580483
        %v619 = vmul.f32 %v614, %v618
        %v620 = vadd.f32 %v619, 0.05243302
        %v621 = vmul.f32 %v614, %v620
        %v622 = vadd.f32 %v621, 0.18741608
        %v623 = vmul.f32 %v614, %v622
        %v624 = vadd.f32 %v623, 1.1283791
        %v625 = vmul.f32 %v581, %v624
        %v626 = vmul.f32 %v614, 3.8918573e-05
        %v627 = vadd.f32 %v626, 0.001143296
        %v628 = vmul.f32 %v614, %v627
        %v629 = vadd.f32 %v628, 0.014752088
        %v630 = vmul.f32 %v614, %v629
        %v631 = vadd.f32 %v630, 0.112945676
        %v632 = vmul.f32 %v614, %v631
        %v633 = vadd.f32 %v632, 0.4994258
        %v634 = vmul.f32 %v614, %v633
        %v635 = vadd.f32 %v634, 1.0
        %v636 = vrcp.pop %v635
        %v637 = vmul.f32 %v635, %v636
        %v638 = vsub.f32 1.0, %v637
        %v639 = vmul.f32 %v636, %v638
        %v640 = vadd.f32 %v636, %v639
        %vm641 = vweird.f32 %v635
        %vm642 = vweird.f32 %v636
        %vm643 = vmor %vm641, %vm642
        %v644 = vsel %vm643, %v636, %v640
        %v645 = vand.u32 2147483647, %v635
        %vm646 = vcmp.eq.f32.partialorder %v645, 8.507059e+37
        %v647 = vand.u32 %v635, 2147483648
        %v648 = vor.u32 1.1754944e-38, %v647
        %v649 = vsel %vm646, %v648, %v644
        %v650 = vmul.f32 %v625, %v649
        %v651 = vmin.f32 %v650, 1.0
        %v652 = vmax.f32 %v651, -1.0
        %v653 = vmul.f32 %v582, %v582
        %v654 = vmin.f32 16.0, %v653
        %v655 = vmul.f32 %v654, 2.1237322e-06
        %v656 = vadd.f32 %v655, 0.00028619796
        %v657 = vmul.f32 %v654, %v656
        %v658 = vadd.f32 %v657, 0.0036580483
        %v659 = vmul.f32 %v654, %v658
        %v660 = vadd.f32 %v659, 0.05243302
        %v661 = vmul.f32 %v654, %v660
        %v662 = vadd.f32 %v661, 0.18741608
        %v663 = vmul.f32 %v654, %v662
        %v664 = vadd.f32 %v663, 1.1283791
        %v665 = vmul.f32 %v582, %v664
        %v666 = vmul.f32 %v654, 3.8918573e-05
        %v667 = vadd.f32 %v666, 0.001143296
        %v668 = vmul.f32 %v654, %v667
        %v669 = vadd.f32 %v668, 0.014752088
        %v670 = vmul.f32 %v654, %v669
        %v671 = vadd.f32 %v670, 0.112945676
        %v672 = vmul.f32 %v654, %v671
        %v673 = vadd.f32 %v672, 0.4994258
        %v674 = vmul.f32 %v654, %v673
        %v675 = vadd.f32 %v674, 1.0
        %v676 = vrcp.pop %v675
        %v677 = vmul.f32 %v675, %v676
        %v678 = vsub.f32 1.0, %v677
        %v679 = vmul.f32 %v676, %v678
        %v680 = vadd.f32 %v676, %v679
        %vm681 = vweird.f32 %v675
        %vm682 = vweird.f32 %v676
        %vm683 = vmor %vm681, %vm682
        %v684 = vsel %vm683, %v676, %v680
        %v685 = vand.u32 2147483647, %v675
        %vm686 = vcmp.eq.f32.partialorder %v685, 8.507059e+37
        %v687 = vand.u32 %v675, 2147483648
        %v688 = vor.u32 1.1754944e-38, %v687
        %v689 = vsel %vm686, %v688, %v684
        %v690 = vmul.f32 %v665, %v689
        %v691 = vmin.f32 %v690, 1.0
        %v692 = vmax.f32 %v691, -1.0
        %v693 = vmul.f32 %v583, %v583
        %v694 = vmin.f32 16.0, %v693
        %v695 = vmul.f32 %v694, 2.1237322e-06
        %v696 = vadd.f32 %v695, 0.00028619796
        %v697 = vmul.f32 %v694, %v696
        %v698 = vadd.f32 %v697, 0.0036580483
        %v699 = vmul.f32 %v694, %v698
        %v700 = vadd.f32 %v699, 0.05243302
        %v701 = vmul.f32 %v694, %v700
        %v702 = vadd.f32 %v701, 0.18741608
        %v703 = vmul.f32 %v694, %v702
        %v704 = vadd.f32 %v703, 1.1283791
        %v705 = vmul.f32 %v583, %v704
        %v706 = vmul.f32 %v694, 3.8918573e-05
        %v707 = vadd.f32 %v706, 0.001143296
        %v708 = vmul.f32 %v694, %v707
        %v709 = vadd.f32 %v708, 0.014752088
        %v710 = vmul.f32 %v694, %v709
        %v711 = vadd.f32 %v710, 0.112945676
        %v712 = vmul.f32 %v694, %v711
        %v713 = vadd.f32 %v712, 0.4994258
        %v714 = vmul.f32 %v694, %v713
        %v715 = vadd.f32 %v714, 1.0
        %v716 = vrcp.pop %v715
        %v717 = vmul.f32 %v715, %v716
        %v718 = vsub.f32 1.0, %v717
        %v719 = vmul.f32 %v716, %v718
        %v720 = vadd.f32 %v716, %v719
        %vm721 = vweird.f32 %v715
        %vm722 = vweird.f32 %v716
        %vm723 = vmor %vm721, %vm722
        %v724 = vsel %vm723, %v716, %v720
        %v725 = vand.u32 2147483647, %v715
        %vm726 = vcmp.eq.f32.partialorder %v725, 8.507059e+37
        %v727 = vand.u32 %v715, 2147483648
        %v728 = vor.u32 1.1754944e-38, %v727
        %v729 = vsel %vm726, %v728, %v724
        %v730 = vmul.f32 %v705, %v729
        %v731 = vmin.f32 %v730, 1.0
        %v732 = vmax.f32 %v731, -1.0
        %v733 = vmul.f32 %v584, %v584
        %v734 = vmin.f32 16.0, %v733
        %v735 = vmul.f32 %v734, 2.1237322e-06
        %v736 = vadd.f32 %v735, 0.00028619796
        %v737 = vmul.f32 %v734, %v736
        %v738 = vadd.f32 %v737, 0.0036580483
        %v739 = vmul.f32 %v734, %v738
        %v740 = vadd.f32 %v739, 0.05243302
        %v741 = vmul.f32 %v734, %v740
        %v742 = vadd.f32 %v741, 0.18741608
        %v743 = vmul.f32 %v734, %v742
        %v744 = vadd.f32 %v743, 1.1283791
        %v745 = vmul.f32 %v584, %v744
        %v746 = vmul.f32 %v734, 3.8918573e-05
        %v747 = vadd.f32 %v746, 0.001143296
        %v748 = vmul.f32 %v734, %v747
        %v749 = vadd.f32 %v748, 0.014752088
        %v750 = vmul.f32 %v734, %v749
        %v751 = vadd.f32 %v750, 0.112945676
        %v752 = vmul.f32 %v734, %v751
        %v753 = vadd.f32 %v752, 0.4994258
        %v754 = vmul.f32 %v734, %v753
        %v755 = vadd.f32 %v754, 1.0
        %v756 = vrcp.pop %v755
        %v757 = vmul.f32 %v755, %v756
        %v758 = vsub.f32 1.0, %v757
        %v759 = vmul.f32 %v756, %v758
        %v760 = vadd.f32 %v756, %v759
        %vm761 = vweird.f32 %v755
        %vm762 = vweird.f32 %v756
        %vm763 = vmor %vm761, %vm762
        %v764 = vsel %vm763, %v756, %v760
        %v765 = vand.u32 2147483647, %v755
        %vm766 = vcmp.eq.f32.partialorder %v765, 8.507059e+37
        %v767 = vand.u32 %v755, 2147483648
        %v768 = vor.u32 1.1754944e-38, %v767
        %v769 = vsel %vm766, %v768, %v764
        %v770 = vmul.f32 %v745, %v769
        %v771 = vmin.f32 %v770, 1.0
        %v772 = vmax.f32 %v771, -1.0
        %v773 = vmul.f32 %v585, %v585
        %v774 = vmin.f32 16.0, %v773
        %v775 = vmul.f32 %v774, 2.1237322e-06
        %v776 = vadd.f32 %v775, 0.00028619796
        %v777 = vmul.f32 %v774, %v776
        %v778 = vadd.f32 %v777, 0.0036580483
        %v779 = vmul.f32 %v774, %v778
        %v780 = vadd.f32 %v779, 0.05243302
        %v781 = vmul.f32 %v774, %v780
        %v782 = vadd.f32 %v781, 0.18741608
        %v783 = vmul.f32 %v774, %v782
        %v784 = vadd.f32 %v783, 1.1283791
        %v785 = vmul.f32 %v585, %v784
        %v786 = vmul.f32 %v774, 3.8918573e-05
        %v787 = vadd.f32 %v786, 0.001143296
        %v788 = vmul.f32 %v774, %v787
        %v789 = vadd.f32 %v788, 0.014752088
        %v790 = vmul.f32 %v774, %v789
        %v791 = vadd.f32 %v790, 0.112945676
        %v792 = vmul.f32 %v774, %v791
        %v793 = vadd.f32 %v792, 0.4994258
        %v794 = vmul.f32 %v774, %v793
        %v795 = vadd.f32 %v794, 1.0
        %v796 = vrcp.pop %v795
        %v797 = vmul.f32 %v795, %v796
        %v798 = vsub.f32 1.0, %v797
        %v799 = vmul.f32 %v796, %v798
        %v800 = vadd.f32 %v796, %v799
        %vm801 = vweird.f32 %v795
        %vm802 = vweird.f32 %v796
        %vm803 = vmor %vm801, %vm802
        %v804 = vsel %vm803, %v796, %v800
        %v805 = vand.u32 2147483647, %v795
        %vm806 = vcmp.eq.f32.partialorder %v805, 8.507059e+37
        %v807 = vand.u32 %v795, 2147483648
        %v808 = vor.u32 1.1754944e-38, %v807
        %v809 = vsel %vm806, %v808, %v804
        %v810 = vmul.f32 %v785, %v809
        %v811 = vmin.f32 %v810, 1.0
        %v812 = vmax.f32 %v811, -1.0
        %v813 = vmul.f32 %v586, %v586
        %v814 = vmin.f32 16.0, %v813
        %v815 = vmul.f32 %v814, 2.1237322e-06
        %v816 = vadd.f32 %v815, 0.00028619796
        %v817 = vmul.f32 %v814, %v816
        %v818 = vadd.f32 %v817, 0.0036580483
        %v819 = vmul.f32 %v814, %v818
        %v820 = vadd.f32 %v819, 0.05243302
        %v821 = vmul.f32 %v814, %v820
        %v822 = vadd.f32 %v821, 0.18741608
        %v823 = vmul.f32 %v814, %v822
        %v824 = vadd.f32 %v823, 1.1283791
        %v825 = vmul.f32 %v586, %v824
        %v826 = vmul.f32 %v814, 3.8918573e-05
        %v827 = vadd.f32 %v826, 0.001143296
        %v828 = vmul.f32 %v814, %v827
        %v829 = vadd.f32 %v828, 0.014752088
        %v830 = vmul.f32 %v814, %v829
        %v831 = vadd.f32 %v830, 0.112945676
        %v832 = vmul.f32 %v814, %v831
        %v833 = vadd.f32 %v832, 0.4994258
        %v834 = vmul.f32 %v814, %v833
        %v835 = vadd.f32 %v834, 1.0
        %v836 = vrcp.pop %v835
        %v837 = vmul.f32 %v835, %v836
        %v838 = vsub.f32 1.0, %v837
        %v839 = vmul.f32 %v836, %v838
        %v840 = vadd.f32 %v836, %v839
        %vm841 = vweird.f32 %v835
        %vm842 = vweird.f32 %v836
        %vm843 = vmor %vm841, %vm842
        %v844 = vsel %vm843, %v836, %v840
        %v845 = vand.u32 2147483647, %v835
        %vm846 = vcmp.eq.f32.partialorder %v845, 8.507059e+37
        %v847 = vand.u32 %v835, 2147483648
        %v848 = vor.u32 1.1754944e-38, %v847
        %v849 = vsel %vm846, %v848, %v844
        %v850 = vmul.f32 %v825, %v849
        %v851 = vmin.f32 %v850, 1.0
        %v852 = vmax.f32 %v851, -1.0
        %v853 = vmul.f32 %v587, %v587
        %v854 = vmin.f32 16.0, %v853
        %v855 = vmul.f32 %v854, 2.1237322e-06
        %v856 = vadd.f32 %v855, 0.00028619796
        %v857 = vmul.f32 %v854, %v856
        %v858 = vadd.f32 %v857, 0.0036580483
        %v859 = vmul.f32 %v854, %v858
        %v860 = vadd.f32 %v859, 0.05243302
        %v861 = vmul.f32 %v854, %v860
        %v862 = vadd.f32 %v861, 0.18741608
        %v863 = vmul.f32 %v854, %v862
        %v864 = vadd.f32 %v863, 1.1283791
        %v865 = vmul.f32 %v587, %v864
        %v866 = vmul.f32 %v854, 3.8918573e-05
        %v867 = vadd.f32 %v866, 0.001143296
        %v868 = vmul.f32 %v854, %v867
        %v869 = vadd.f32 %v868, 0.014752088
        %v870 = vmul.f32 %v854, %v869
        %v871 = vadd.f32 %v870, 0.112945676
        %v872 = vmul.f32 %v854, %v871
        %v873 = vadd.f32 %v872, 0.4994258
        %v874 = vmul.f32 %v854, %v873
        %v875 = vadd.f32 %v874, 1.0
        %v876 = vrcp.pop %v875
        %v877 = vmul.f32 %v875, %v876
        %v878 = vsub.f32 1.0, %v877
        %v879 = vmul.f32 %v876, %v878
        %v880 = vadd.f32 %v876, %v879
        %vm881 = vweird.f32 %v875
        %vm882 = vweird.f32 %v876
        %vm883 = vmor %vm881, %vm882
        %v884 = vsel %vm883, %v876, %v880
        %v885 = vand.u32 2147483647, %v875
        %vm886 = vcmp.eq.f32.partialorder %v885, 8.507059e+37
        %v887 = vand.u32 %v875, 2147483648
        %v888 = vor.u32 1.1754944e-38, %v887
        %v889 = vsel %vm886, %v888, %v884
        %v890 = vmul.f32 %v865, %v889
        %v891 = vmin.f32 %v890, 1.0
        %v892 = vmax.f32 %v891, -1.0
        %v893 = vmul.f32 %v588, %v588
        %v894 = vmin.f32 16.0, %v893
        %v895 = vmul.f32 %v894, 2.1237322e-06
        %v896 = vadd.f32 %v895, 0.00028619796
        %v897 = vmul.f32 %v894, %v896
        %v898 = vadd.f32 %v897, 0.0036580483
        %v899 = vmul.f32 %v894, %v898
        %v900 = vadd.f32 %v899, 0.05243302
        %v901 = vmul.f32 %v894, %v900
        %v902 = vadd.f32 %v901, 0.18741608
        %v903 = vmul.f32 %v894, %v902
        %v904 = vadd.f32 %v903, 1.1283791
        %v905 = vmul.f32 %v588, %v904
        %v906 = vmul.f32 %v894, 3.8918573e-05
        %v907 = vadd.f32 %v906, 0.001143296
        %v908 = vmul.f32 %v894, %v907
        %v909 = vadd.f32 %v908, 0.014752088
        %v910 = vmul.f32 %v894, %v909
        %v911 = vadd.f32 %v910, 0.112945676
        %v912 = vmul.f32 %v894, %v911
        %v913 = vadd.f32 %v912, 0.4994258
        %v914 = vmul.f32 %v894, %v913
        %v915 = vadd.f32 %v914, 1.0
        %v916 = vrcp.pop %v915
        %v917 = vmul.f32 %v915, %v916
        %v918 = vsub.f32 1.0, %v917
        %v919 = vmul.f32 %v916, %v918
        %v920 = vadd.f32 %v916, %v919
        %vm921 = vweird.f32 %v915
        %vm922 = vweird.f32 %v916
        %vm923 = vmor %vm921, %vm922
        %v924 = vsel %vm923, %v916, %v920
        %v925 = vand.u32 2147483647, %v915
        %vm926 = vcmp.eq.f32.partialorder %v925, 8.507059e+37
        %v927 = vand.u32 %v915, 2147483648
        %v928 = vor.u32 1.1754944e-38, %v927
        %v929 = vsel %vm926, %v928, %v924
        %v930 = vmul.f32 %v905, %v929
        %v931 = vmin.f32 %v930, 1.0
        %v932 = vmax.f32 %v931, -1.0
        %v933 = vmul.f32 %v589, %v589
        %v934 = vmin.f32 16.0, %v933
        %v935 = vmul.f32 %v934, 2.1237322e-06
        %v936 = vadd.f32 %v935, 0.00028619796
        %v937 = vmul.f32 %v934, %v936
        %v938 = vadd.f32 %v937, 0.0036580483
        %v939 = vmul.f32 %v934, %v938
        %v940 = vadd.f32 %v939, 0.05243302
        %v941 = vmul.f32 %v934, %v940
        %v942 = vadd.f32 %v941, 0.18741608
        %v943 = vmul.f32 %v934, %v942
        %v944 = vadd.f32 %v943, 1.1283791
        %v945 = vmul.f32 %v589, %v944
        %v946 = vmul.f32 %v934, 3.8918573e-05
        %v947 = vadd.f32 %v946, 0.001143296
        %v948 = vmul.f32 %v934, %v947
        %v949 = vadd.f32 %v948, 0.014752088
        %v950 = vmul.f32 %v934, %v949
        %v951 = vadd.f32 %v950, 0.112945676
        %v952 = vmul.f32 %v934, %v951
        %v953 = vadd.f32 %v952, 0.4994258
        %v954 = vmul.f32 %v934, %v953
        %v955 = vadd.f32 %v954, 1.0
        %v956 = vrcp.pop %v955
        %v957 = vmul.f32 %v955, %v956
        %v958 = vsub.f32 1.0, %v957
        %v959 = vmul.f32 %v956, %v958
        %v960 = vadd.f32 %v956, %v959
        %vm961 = vweird.f32 %v955
        %vm962 = vweird.f32 %v956
        %vm963 = vmor %vm961, %vm962
        %v964 = vsel %vm963, %v956, %v960
        %v965 = vand.u32 2147483647, %v955
        %vm966 = vcmp.eq.f32.partialorder %v965, 8.507059e+37
        %v967 = vand.u32 %v955, 2147483648
        %v968 = vor.u32 1.1754944e-38, %v967
        %v969 = vsel %vm966, %v968, %v964
        %v970 = vmul.f32 %v945, %v969
        %v971 = vmin.f32 %v970, 1.0
        %v972 = vmax.f32 %v971, -1.0
        %v973 = vmul.f32 %v590, %v590
        %v974 = vmin.f32 16.0, %v973
        %v975 = vmul.f32 %v974, 2.1237322e-06
        %v976 = vadd.f32 %v975, 0.00028619796
        %v977 = vmul.f32 %v974, %v976
        %v978 = vadd.f32 %v977, 0.0036580483
        %v979 = vmul.f32 %v974, %v978
        %v980 = vadd.f32 %v979, 0.05243302
        %v981 = vmul.f32 %v974, %v980
        %v982 = vadd.f32 %v981, 0.18741608
        %v983 = vmul.f32 %v974, %v982
        %v984 = vadd.f32 %v983, 1.1283791
        %v985 = vmul.f32 %v590, %v984
        %v986 = vmul.f32 %v974, 3.8918573e-05
        %v987 = vadd.f32 %v986, 0.001143296
        %v988 = vmul.f32 %v974, %v987
        %v989 = vadd.f32 %v988, 0.014752088
        %v990 = vmul.f32 %v974, %v989
        %v991 = vadd.f32 %v990, 0.112945676
        %v992 = vmul.f32 %v974, %v991
        %v993 = vadd.f32 %v992, 0.4994258
        %v994 = vmul.f32 %v974, %v993
        %v995 = vadd.f32 %v994, 1.0
        %v996 = vrcp.pop %v995
        %v997 = vmul.f32 %v995, %v996
        %v998 = vsub.f32 1.0, %v997
        %v999 = vmul.f32 %v996, %v998
        %v1000 = vadd.f32 %v996, %v999
        %vm1001 = vweird.f32 %v995
        %vm1002 = vweird.f32 %v996
        %vm1003 = vmor %vm1001, %vm1002
        %v1004 = vsel %vm1003, %v996, %v1000
        %v1005 = vand.u32 2147483647, %v995
        %vm1006 = vcmp.eq.f32.partialorder %v1005, 8.507059e+37
        %v1007 = vand.u32 %v995, 2147483648
        %v1008 = vor.u32 1.1754944e-38, %v1007
        %v1009 = vsel %vm1006, %v1008, %v1004
        %v1010 = vmul.f32 %v985, %v1009
        %v1011 = vmin.f32 %v1010, 1.0
        %v1012 = vmax.f32 %v1011, -1.0
        %v1013 = vmul.f32 %v591, %v591
        %v1014 = vmin.f32 16.0, %v1013
        %v1015 = vmul.f32 %v1014, 2.1237322e-06
        %v1016 = vadd.f32 %v1015, 0.00028619796
        %v1017 = vmul.f32 %v1014, %v1016
        %v1018 = vadd.f32 %v1017, 0.0036580483
        %v1019 = vmul.f32 %v1014, %v1018
        %v1020 = vadd.f32 %v1019, 0.05243302
        %v1021 = vmul.f32 %v1014, %v1020
        %v1022 = vadd.f32 %v1021, 0.18741608
        %v1023 = vmul.f32 %v1014, %v1022
        %v1024 = vadd.f32 %v1023, 1.1283791
        %v1025 = vmul.f32 %v591, %v1024
        %v1026 = vmul.f32 %v1014, 3.8918573e-05
        %v1027 = vadd.f32 %v1026, 0.001143296
        %v1028 = vmul.f32 %v1014, %v1027
        %v1029 = vadd.f32 %v1028, 0.014752088
        %v1030 = vmul.f32 %v1014, %v1029
        %v1031 = vadd.f32 %v1030, 0.112945676
        %v1032 = vmul.f32 %v1014, %v1031
        %v1033 = vadd.f32 %v1032, 0.4994258
        %v1034 = vmul.f32 %v1014, %v1033
        %v1035 = vadd.f32 %v1034, 1.0
        %v1036 = vrcp.pop %v1035
        %v1037 = vmul.f32 %v1035, %v1036
        %v1038 = vsub.f32 1.0, %v1037
        %v1039 = vmul.f32 %v1036, %v1038
        %v1040 = vadd.f32 %v1036, %v1039
        %vm1041 = vweird.f32 %v1035
        %vm1042 = vweird.f32 %v1036
        %vm1043 = vmor %vm1041, %vm1042
        %v1044 = vsel %vm1043, %v1036, %v1040
        %v1045 = vand.u32 2147483647, %v1035
        %vm1046 = vcmp.eq.f32.partialorder %v1045, 8.507059e+37
        %v1047 = vand.u32 %v1035, 2147483648
        %v1048 = vor.u32 1.1754944e-38, %v1047
        %v1049 = vsel %vm1046, %v1048, %v1044
        %v1050 = vmul.f32 %v1025, %v1049
        %v1051 = vmin.f32 %v1050, 1.0
        %v1052 = vmax.f32 %v1051, -1.0
        %v1053 = vmul.f32 %v592, %v592
        %v1054 = vmin.f32 16.0, %v1053
        %v1055 = vmul.f32 %v1054, 2.1237322e-06
        %v1056 = vadd.f32 %v1055, 0.00028619796
        %v1057 = vmul.f32 %v1054, %v1056
        %v1058 = vadd.f32 %v1057, 0.0036580483
        %v1059 = vmul.f32 %v1054, %v1058
        %v1060 = vadd.f32 %v1059, 0.05243302
        %v1061 = vmul.f32 %v1054, %v1060
        %v1062 = vadd.f32 %v1061, 0.18741608
        %v1063 = vmul.f32 %v1054, %v1062
        %v1064 = vadd.f32 %v1063, 1.1283791
        %v1065 = vmul.f32 %v592, %v1064
        %v1066 = vmul.f32 %v1054, 3.8918573e-05
        %v1067 = vadd.f32 %v1066, 0.001143296
        %v1068 = vmul.f32 %v1054, %v1067
        %v1069 = vadd.f32 %v1068, 0.014752088
        %v1070 = vmul.f32 %v1054, %v1069
        %v1071 = vadd.f32 %v1070, 0.112945676
        %v1072 = vmul.f32 %v1054, %v1071
        %v1073 = vadd.f32 %v1072, 0.4994258
        %v1074 = vmul.f32 %v1054, %v1073
        %v1075 = vadd.f32 %v1074, 1.0
        %v1076 = vrcp.pop %v1075
        %v1077 = vmul.f32 %v1075, %v1076
        %v1078 = vsub.f32 1.0, %v1077
        %v1079 = vmul.f32 %v1076, %v1078
        %v1080 = vadd.f32 %v1076, %v1079
        %vm1081 = vweird.f32 %v1075
        %vm1082 = vweird.f32 %v1076
        %vm1083 = vmor %vm1081, %vm1082
        %v1084 = vsel %vm1083, %v1076, %v1080
        %v1085 = vand.u32 2147483647, %v1075
        %vm1086 = vcmp.eq.f32.partialorder %v1085, 8.507059e+37
        %v1087 = vand.u32 %v1075, 2147483648
        %v1088 = vor.u32 1.1754944e-38, %v1087
        %v1089 = vsel %vm1086, %v1088, %v1084
        %v1090 = vmul.f32 %v1065, %v1089
        %v1091 = vmin.f32 %v1090, 1.0
        %v1092 = vmax.f32 %v1091, -1.0
        %v1093 = vmul.f32 %v593, %v593
        %v1094 = vmin.f32 16.0, %v1093
        %v1095 = vmul.f32 %v1094, 2.1237322e-06
        %v1096 = vadd.f32 %v1095, 0.00028619796
        %v1097 = vmul.f32 %v1094, %v1096
        %v1098 = vadd.f32 %v1097, 0.0036580483
        %v1099 = vmul.f32 %v1094, %v1098
        %v1100 = vadd.f32 %v1099, 0.05243302
        %v1101 = vmul.f32 %v1094, %v1100
        %v1102 = vadd.f32 %v1101, 0.18741608
        %v1103 = vmul.f32 %v1094, %v1102
        %v1104 = vadd.f32 %v1103, 1.1283791
        %v1105 = vmul.f32 %v593, %v1104
        %v1106 = vmul.f32 %v1094, 3.8918573e-05
        %v1107 = vadd.f32 %v1106, 0.001143296
        %v1108 = vmul.f32 %v1094, %v1107
        %v1109 = vadd.f32 %v1108, 0.014752088
        %v1110 = vmul.f32 %v1094, %v1109
        %v1111 = vadd.f32 %v1110, 0.112945676
        %v1112 = vmul.f32 %v1094, %v1111
        %v1113 = vadd.f32 %v1112, 0.4994258
        %v1114 = vmul.f32 %v1094, %v1113
        %v1115 = vadd.f32 %v1114, 1.0
        %v1116 = vrcp.pop %v1115
        %v1117 = vmul.f32 %v1115, %v1116
        %v1118 = vsub.f32 1.0, %v1117
        %v1119 = vmul.f32 %v1116, %v1118
        %v1120 = vadd.f32 %v1116, %v1119
        %vm1121 = vweird.f32 %v1115
        %vm1122 = vweird.f32 %v1116
        %vm1123 = vmor %vm1121, %vm1122
        %v1124 = vsel %vm1123, %v1116, %v1120
        %v1125 = vand.u32 2147483647, %v1115
        %vm1126 = vcmp.eq.f32.partialorder %v1125, 8.507059e+37
        %v1127 = vand.u32 %v1115, 2147483648
        %v1128 = vor.u32 1.1754944e-38, %v1127
        %v1129 = vsel %vm1126, %v1128, %v1124
        %v1130 = vmul.f32 %v1105, %v1129
        %v1131 = vmin.f32 %v1130, 1.0
        %v1132 = vmax.f32 %v1131, -1.0
        %v1133 = vmul.f32 %v594, %v594
        %v1134 = vmin.f32 16.0, %v1133
        %v1135 = vmul.f32 %v1134, 2.1237322e-06
        %v1136 = vadd.f32 %v1135, 0.00028619796
        %v1137 = vmul.f32 %v1134, %v1136
        %v1138 = vadd.f32 %v1137, 0.0036580483
        %v1139 = vmul.f32 %v1134, %v1138
        %v1140 = vadd.f32 %v1139, 0.05243302
        %v1141 = vmul.f32 %v1134, %v1140
        %v1142 = vadd.f32 %v1141, 0.18741608
        %v1143 = vmul.f32 %v1134, %v1142
        %v1144 = vadd.f32 %v1143, 1.1283791
        %v1145 = vmul.f32 %v594, %v1144
        %v1146 = vmul.f32 %v1134, 3.8918573e-05
        %v1147 = vadd.f32 %v1146, 0.001143296
        %v1148 = vmul.f32 %v1134, %v1147
        %v1149 = vadd.f32 %v1148, 0.014752088
        %v1150 = vmul.f32 %v1134, %v1149
        %v1151 = vadd.f32 %v1150, 0.112945676
        %v1152 = vmul.f32 %v1134, %v1151
        %v1153 = vadd.f32 %v1152, 0.4994258
        %v1154 = vmul.f32 %v1134, %v1153
        %v1155 = vadd.f32 %v1154, 1.0
        %v1156 = vrcp.pop %v1155
        %v1157 = vmul.f32 %v1155, %v1156
        %v1158 = vsub.f32 1.0, %v1157
        %v1159 = vmul.f32 %v1156, %v1158
        %v1160 = vadd.f32 %v1156, %v1159
        %vm1161 = vweird.f32 %v1155
        %vm1162 = vweird.f32 %v1156
        %vm1163 = vmor %vm1161, %vm1162
        %v1164 = vsel %vm1163, %v1156, %v1160
        %v1165 = vand.u32 2147483647, %v1155
        %vm1166 = vcmp.eq.f32.partialorder %v1165, 8.507059e+37
        %v1167 = vand.u32 %v1155, 2147483648
        %v1168 = vor.u32 1.1754944e-38, %v1167
        %v1169 = vsel %vm1166, %v1168, %v1164
        %v1170 = vmul.f32 %v1145, %v1169
        %v1171 = vmin.f32 %v1170, 1.0
        %v1172 = vmax.f32 %v1171, -1.0
        %v1173 = vmul.f32 %v595, %v595
        %v1174 = vmin.f32 16.0, %v1173
        %v1175 = vmul.f32 %v1174, 2.1237322e-06
        %v1176 = vadd.f32 %v1175, 0.00028619796
        %v1177 = vmul.f32 %v1174, %v1176
        %v1178 = vadd.f32 %v1177, 0.0036580483
        %v1179 = vmul.f32 %v1174, %v1178
        %v1180 = vadd.f32 %v1179, 0.05243302
        %v1181 = vmul.f32 %v1174, %v1180
        %v1182 = vadd.f32 %v1181, 0.18741608
        %v1183 = vmul.f32 %v1174, %v1182
        %v1184 = vadd.f32 %v1183, 1.1283791
        %v1185 = vmul.f32 %v595, %v1184
        %v1186 = vmul.f32 %v1174, 3.8918573e-05
        %v1187 = vadd.f32 %v1186, 0.001143296
        %v1188 = vmul.f32 %v1174, %v1187
        %v1189 = vadd.f32 %v1188, 0.014752088
        %v1190 = vmul.f32 %v1174, %v1189
        %v1191 = vadd.f32 %v1190, 0.112945676
        %v1192 = vmul.f32 %v1174, %v1191
        %v1193 = vadd.f32 %v1192, 0.4994258
        %v1194 = vmul.f32 %v1174, %v1193
        %v1195 = vadd.f32 %v1194, 1.0
        %v1196 = vrcp.pop %v1195
        %v1197 = vmul.f32 %v1195, %v1196
        %v1198 = vsub.f32 1.0, %v1197
        %v1199 = vmul.f32 %v1196, %v1198
        %v1200 = vadd.f32 %v1196, %v1199
        %vm1201 = vweird.f32 %v1195
        %vm1202 = vweird.f32 %v1196
        %vm1203 = vmor %vm1201, %vm1202
        %v1204 = vsel %vm1203, %v1196, %v1200
        %v1205 = vand.u32 2147483647, %v1195
        %vm1206 = vcmp.eq.f32.partialorder %v1205, 8.507059e+37
        %v1207 = vand.u32 %v1195, 2147483648
        %v1208 = vor.u32 1.1754944e-38, %v1207
        %v1209 = vsel %vm1206, %v1208, %v1204
        %v1210 = vmul.f32 %v1185, %v1209
        %v1211 = vmin.f32 %v1210, 1.0
        %v1212 = vmax.f32 %v1211, -1.0
        %v1213 = vmul.f32 %v596, %v596
        %v1214 = vmin.f32 16.0, %v1213
        %v1215 = vmul.f32 %v1214, 2.1237322e-06
        %v1216 = vadd.f32 %v1215, 0.00028619796
        %v1217 = vmul.f32 %v1214, %v1216
        %v1218 = vadd.f32 %v1217, 0.0036580483
        %v1219 = vmul.f32 %v1214, %v1218
        %v1220 = vadd.f32 %v1219, 0.05243302
        %v1221 = vmul.f32 %v1214, %v1220
        %v1222 = vadd.f32 %v1221, 0.18741608
        %v1223 = vmul.f32 %v1214, %v1222
        %v1224 = vadd.f32 %v1223, 1.1283791
        %v1225 = vmul.f32 %v596, %v1224
        %v1226 = vmul.f32 %v1214, 3.8918573e-05
        %v1227 = vadd.f32 %v1226, 0.001143296
        %v1228 = vmul.f32 %v1214, %v1227
        %v1229 = vadd.f32 %v1228, 0.014752088
        %v1230 = vmul.f32 %v1214, %v1229
        %v1231 = vadd.f32 %v1230, 0.112945676
        %v1232 = vmul.f32 %v1214, %v1231
        %v1233 = vadd.f32 %v1232, 0.4994258
        %v1234 = vmul.f32 %v1214, %v1233
        %v1235 = vadd.f32 %v1234, 1.0
        %v1236 = vrcp.pop %v1235
        %v1237 = vmul.f32 %v1235, %v1236
        %v1238 = vsub.f32 1.0, %v1237
        %v1239 = vmul.f32 %v1236, %v1238
        %v1240 = vadd.f32 %v1236, %v1239
        %vm1241 = vweird.f32 %v1235
        %vm1242 = vweird.f32 %v1236
        %vm1243 = vmor %vm1241, %vm1242
        %v1244 = vsel %vm1243, %v1236, %v1240
        %v1245 = vand.u32 2147483647, %v1235
        %vm1246 = vcmp.eq.f32.partialorder %v1245, 8.507059e+37
        %v1247 = vand.u32 %v1235, 2147483648
        %v1248 = vor.u32 1.1754944e-38, %v1247
        %v1249 = vsel %vm1246, %v1248, %v1244
        %v1250 = vmul.f32 %v1225, %v1249
        %v1251 = vmin.f32 %v1250, 1.0
        %v1252 = vmax.f32 %v1251, -1.0
        %v1253 = vmul.f32 %v597, %v597
        %v1254 = vmin.f32 16.0, %v1253
        %v1255 = vmul.f32 %v1254, 2.1237322e-06
        %v1256 = vadd.f32 %v1255, 0.00028619796
        %v1257 = vmul.f32 %v1254, %v1256
        %v1258 = vadd.f32 %v1257, 0.0036580483
        %v1259 = vmul.f32 %v1254, %v1258
        %v1260 = vadd.f32 %v1259, 0.05243302
        %v1261 = vmul.f32 %v1254, %v1260
        %v1262 = vadd.f32 %v1261, 0.18741608
        %v1263 = vmul.f32 %v1254, %v1262
        %v1264 = vadd.f32 %v1263, 1.1283791
        %v1265 = vmul.f32 %v597, %v1264
        %v1266 = vmul.f32 %v1254, 3.8918573e-05
        %v1267 = vadd.f32 %v1266, 0.001143296
        %v1268 = vmul.f32 %v1254, %v1267
        %v1269 = vadd.f32 %v1268, 0.014752088
        %v1270 = vmul.f32 %v1254, %v1269
        %v1271 = vadd.f32 %v1270, 0.112945676
        %v1272 = vmul.f32 %v1254, %v1271
        %v1273 = vadd.f32 %v1272, 0.4994258
        %v1274 = vmul.f32 %v1254, %v1273
        %v1275 = vadd.f32 %v1274, 1.0
        %v1276 = vrcp.pop %v1275
        %v1277 = vmul.f32 %v1275, %v1276
        %v1278 = vsub.f32 1.0, %v1277
        %v1279 = vmul.f32 %v1276, %v1278
        %v1280 = vadd.f32 %v1276, %v1279
        %vm1281 = vweird.f32 %v1275
        %vm1282 = vweird.f32 %v1276
        %vm1283 = vmor %vm1281, %vm1282
        %v1284 = vsel %vm1283, %v1276, %v1280
        %v1285 = vand.u32 2147483647, %v1275
        %vm1286 = vcmp.eq.f32.partialorder %v1285, 8.507059e+37
        %v1287 = vand.u32 %v1275, 2147483648
        %v1288 = vor.u32 1.1754944e-38, %v1287
        %v1289 = vsel %vm1286, %v1288, %v1284
        %v1290 = vmul.f32 %v1265, %v1289
        %v1291 = vmin.f32 %v1290, 1.0
        %v1292 = vmax.f32 %v1291, -1.0
        %v1293 = vmul.f32 %v598, %v598
        %v1294 = vmin.f32 16.0, %v1293
        %v1295 = vmul.f32 %v1294, 2.1237322e-06
        %v1296 = vadd.f32 %v1295, 0.00028619796
        %v1297 = vmul.f32 %v1294, %v1296
        %v1298 = vadd.f32 %v1297, 0.0036580483
        %v1299 = vmul.f32 %v1294, %v1298
        %v1300 = vadd.f32 %v1299, 0.05243302
        %v1301 = vmul.f32 %v1294, %v1300
        %v1302 = vadd.f32 %v1301, 0.18741608
        %v1303 = vmul.f32 %v1294, %v1302
        %v1304 = vadd.f32 %v1303, 1.1283791
        %v1305 = vmul.f32 %v598, %v1304
        %v1306 = vmul.f32 %v1294, 3.8918573e-05
        %v1307 = vadd.f32 %v1306, 0.001143296
        %v1308 = vmul.f32 %v1294, %v1307
        %v1309 = vadd.f32 %v1308, 0.014752088
        %v1310 = vmul.f32 %v1294, %v1309
        %v1311 = vadd.f32 %v1310, 0.112945676
        %v1312 = vmul.f32 %v1294, %v1311
        %v1313 = vadd.f32 %v1312, 0.4994258
        %v1314 = vmul.f32 %v1294, %v1313
        %v1315 = vadd.f32 %v1314, 1.0
        %v1316 = vrcp.pop %v1315
        %v1317 = vmul.f32 %v1315, %v1316
        %v1318 = vsub.f32 1.0, %v1317
        %v1319 = vmul.f32 %v1316, %v1318
        %v1320 = vadd.f32 %v1316, %v1319
        %vm1321 = vweird.f32 %v1315
        %vm1322 = vweird.f32 %v1316
        %vm1323 = vmor %vm1321, %vm1322
        %v1324 = vsel %vm1323, %v1316, %v1320
        %v1325 = vand.u32 2147483647, %v1315
        %vm1326 = vcmp.eq.f32.partialorder %v1325, 8.507059e+37
        %v1327 = vand.u32 %v1315, 2147483648
        %v1328 = vor.u32 1.1754944e-38, %v1327
        %v1329 = vsel %vm1326, %v1328, %v1324
        %v1330 = vmul.f32 %v1305, %v1329
        %v1331 = vmin.f32 %v1330, 1.0
        %v1332 = vmax.f32 %v1331, -1.0
        %v1333 = vmul.f32 %v599, %v599
        %v1334 = vmin.f32 16.0, %v1333
        %v1335 = vmul.f32 %v1334, 2.1237322e-06
        %v1336 = vadd.f32 %v1335, 0.00028619796
        %v1337 = vmul.f32 %v1334, %v1336
        %v1338 = vadd.f32 %v1337, 0.0036580483
        %v1339 = vmul.f32 %v1334, %v1338
        %v1340 = vadd.f32 %v1339, 0.05243302
        %v1341 = vmul.f32 %v1334, %v1340
        %v1342 = vadd.f32 %v1341, 0.18741608
        %v1343 = vmul.f32 %v1334, %v1342
        %v1344 = vadd.f32 %v1343, 1.1283791
        %v1345 = vmul.f32 %v599, %v1344
        %v1346 = vmul.f32 %v1334, 3.8918573e-05
        %v1347 = vadd.f32 %v1346, 0.001143296
        %v1348 = vmul.f32 %v1334, %v1347
        %v1349 = vadd.f32 %v1348, 0.014752088
        %v1350 = vmul.f32 %v1334, %v1349
        %v1351 = vadd.f32 %v1350, 0.112945676
        %v1352 = vmul.f32 %v1334, %v1351
        %v1353 = vadd.f32 %v1352, 0.4994258
        %v1354 = vmul.f32 %v1334, %v1353
        %v1355 = vadd.f32 %v1354, 1.0
        %v1356 = vrcp.pop %v1355
        %v1357 = vmul.f32 %v1355, %v1356
        %v1358 = vsub.f32 1.0, %v1357
        %v1359 = vmul.f32 %v1356, %v1358
        %v1360 = vadd.f32 %v1356, %v1359
        %vm1361 = vweird.f32 %v1355
        %vm1362 = vweird.f32 %v1356
        %vm1363 = vmor %vm1361, %vm1362
        %v1364 = vsel %vm1363, %v1356, %v1360
        %v1365 = vand.u32 2147483647, %v1355
        %vm1366 = vcmp.eq.f32.partialorder %v1365, 8.507059e+37
        %v1367 = vand.u32 %v1355, 2147483648
        %v1368 = vor.u32 1.1754944e-38, %v1367
        %v1369 = vsel %vm1366, %v1368, %v1364
        %v1370 = vmul.f32 %v1345, %v1369
        %v1371 = vmin.f32 %v1370, 1.0
        %v1372 = vmax.f32 %v1371, -1.0
        %v1373 = vmul.f32 %v600, %v600
        %v1374 = vmin.f32 16.0, %v1373
        %v1375 = vmul.f32 %v1374, 2.1237322e-06
        %v1376 = vadd.f32 %v1375, 0.00028619796
        %v1377 = vmul.f32 %v1374, %v1376
        %v1378 = vadd.f32 %v1377, 0.0036580483
        %v1379 = vmul.f32 %v1374, %v1378
        %v1380 = vadd.f32 %v1379, 0.05243302
        %v1381 = vmul.f32 %v1374, %v1380
        %v1382 = vadd.f32 %v1381, 0.18741608
        %v1383 = vmul.f32 %v1374, %v1382
        %v1384 = vadd.f32 %v1383, 1.1283791
        %v1385 = vmul.f32 %v600, %v1384
        %v1386 = vmul.f32 %v1374, 3.8918573e-05
        %v1387 = vadd.f32 %v1386, 0.001143296
        %v1388 = vmul.f32 %v1374, %v1387
        %v1389 = vadd.f32 %v1388, 0.014752088
        %v1390 = vmul.f32 %v1374, %v1389
        %v1391 = vadd.f32 %v1390, 0.112945676
        %v1392 = vmul.f32 %v1374, %v1391
        %v1393 = vadd.f32 %v1392, 0.4994258
        %v1394 = vmul.f32 %v1374, %v1393
        %v1395 = vadd.f32 %v1394, 1.0
        %v1396 = vrcp.pop %v1395
        %v1397 = vmul.f32 %v1395, %v1396
        %v1398 = vsub.f32 1.0, %v1397
        %v1399 = vmul.f32 %v1396, %v1398
        %v1400 = vadd.f32 %v1396, %v1399
        %vm1401 = vweird.f32 %v1395
        %vm1402 = vweird.f32 %v1396
        %vm1403 = vmor %vm1401, %vm1402
        %v1404 = vsel %vm1403, %v1396, %v1400
        %v1405 = vand.u32 2147483647, %v1395
        %vm1406 = vcmp.eq.f32.partialorder %v1405, 8.507059e+37
        %v1407 = vand.u32 %v1395, 2147483648
        %v1408 = vor.u32 1.1754944e-38, %v1407
        %v1409 = vsel %vm1406, %v1408, %v1404
        %v1410 = vmul.f32 %v1385, %v1409
        %v1411 = vmin.f32 %v1410, 1.0
        %v1412 = vmax.f32 %v1411, -1.0
        %v1413 = vmul.f32 %v601, %v601
        %v1414 = vmin.f32 16.0, %v1413
        %v1415 = vmul.f32 %v1414, 2.1237322e-06
        %v1416 = vadd.f32 %v1415, 0.00028619796
        %v1417 = vmul.f32 %v1414, %v1416
        %v1418 = vadd.f32 %v1417, 0.0036580483
        %v1419 = vmul.f32 %v1414, %v1418
        %v1420 = vadd.f32 %v1419, 0.05243302
        %v1421 = vmul.f32 %v1414, %v1420
        %v1422 = vadd.f32 %v1421, 0.18741608
        %v1423 = vmul.f32 %v1414, %v1422
        %v1424 = vadd.f32 %v1423, 1.1283791
        %v1425 = vmul.f32 %v601, %v1424
        %v1426 = vmul.f32 %v1414, 3.8918573e-05
        %v1427 = vadd.f32 %v1426, 0.001143296
        %v1428 = vmul.f32 %v1414, %v1427
        %v1429 = vadd.f32 %v1428, 0.014752088
        %v1430 = vmul.f32 %v1414, %v1429
        %v1431 = vadd.f32 %v1430, 0.112945676
        %v1432 = vmul.f32 %v1414, %v1431
        %v1433 = vadd.f32 %v1432, 0.4994258
        %v1434 = vmul.f32 %v1414, %v1433
        %v1435 = vadd.f32 %v1434, 1.0
        %v1436 = vrcp.pop %v1435
        %v1437 = vmul.f32 %v1435, %v1436
        %v1438 = vsub.f32 1.0, %v1437
        %v1439 = vmul.f32 %v1436, %v1438
        %v1440 = vadd.f32 %v1436, %v1439
        %vm1441 = vweird.f32 %v1435
        %vm1442 = vweird.f32 %v1436
        %vm1443 = vmor %vm1441, %vm1442
        %v1444 = vsel %vm1443, %v1436, %v1440
        %v1445 = vand.u32 2147483647, %v1435
        %vm1446 = vcmp.eq.f32.partialorder %v1445, 8.507059e+37
        %v1447 = vand.u32 %v1435, 2147483648
        %v1448 = vor.u32 1.1754944e-38, %v1447
        %v1449 = vsel %vm1446, %v1448, %v1444
        %v1450 = vmul.f32 %v1425, %v1449
        %v1451 = vmin.f32 %v1450, 1.0
        %v1452 = vmax.f32 %v1451, -1.0
        %v1453 = vmul.f32 %v602, %v602
        %v1454 = vmin.f32 16.0, %v1453
        %v1455 = vmul.f32 %v1454, 2.1237322e-06
        %v1456 = vadd.f32 %v1455, 0.00028619796
        %v1457 = vmul.f32 %v1454, %v1456
        %v1458 = vadd.f32 %v1457, 0.0036580483
        %v1459 = vmul.f32 %v1454, %v1458
        %v1460 = vadd.f32 %v1459, 0.05243302
        %v1461 = vmul.f32 %v1454, %v1460
        %v1462 = vadd.f32 %v1461, 0.18741608
        %v1463 = vmul.f32 %v1454, %v1462
        %v1464 = vadd.f32 %v1463, 1.1283791
        %v1465 = vmul.f32 %v602, %v1464
        %v1466 = vmul.f32 %v1454, 3.8918573e-05
        %v1467 = vadd.f32 %v1466, 0.001143296
        %v1468 = vmul.f32 %v1454, %v1467
        %v1469 = vadd.f32 %v1468, 0.014752088
        %v1470 = vmul.f32 %v1454, %v1469
        %v1471 = vadd.f32 %v1470, 0.112945676
        %v1472 = vmul.f32 %v1454, %v1471
        %v1473 = vadd.f32 %v1472, 0.4994258
        %v1474 = vmul.f32 %v1454, %v1473
        %v1475 = vadd.f32 %v1474, 1.0
        %v1476 = vrcp.pop %v1475
        %v1477 = vmul.f32 %v1475, %v1476
        %v1478 = vsub.f32 1.0, %v1477
        %v1479 = vmul.f32 %v1476, %v1478
        %v1480 = vadd.f32 %v1476, %v1479
        %vm1481 = vweird.f32 %v1475
        %vm1482 = vweird.f32 %v1476
        %vm1483 = vmor %vm1481, %vm1482
        %v1484 = vsel %vm1483, %v1476, %v1480
        %v1485 = vand.u32 2147483647, %v1475
        %vm1486 = vcmp.eq.f32.partialorder %v1485, 8.507059e+37
        %v1487 = vand.u32 %v1475, 2147483648
        %v1488 = vor.u32 1.1754944e-38, %v1487
        %v1489 = vsel %vm1486, %v1488, %v1484
        %v1490 = vmul.f32 %v1465, %v1489
        %v1491 = vmin.f32 %v1490, 1.0
        %v1492 = vmax.f32 %v1491, -1.0
        %v1493 = vmul.f32 %v603, %v603
        %v1494 = vmin.f32 16.0, %v1493
        %v1495 = vmul.f32 %v1494, 2.1237322e-06
        %v1496 = vadd.f32 %v1495, 0.00028619796
        %v1497 = vmul.f32 %v1494, %v1496
        %v1498 = vadd.f32 %v1497, 0.0036580483
        %v1499 = vmul.f32 %v1494, %v1498
        %v1500 = vadd.f32 %v1499, 0.05243302
        %v1501 = vmul.f32 %v1494, %v1500
        %v1502 = vadd.f32 %v1501, 0.18741608
        %v1503 = vmul.f32 %v1494, %v1502
        %v1504 = vadd.f32 %v1503, 1.1283791
        %v1505 = vmul.f32 %v603, %v1504
        %v1506 = vmul.f32 %v1494, 3.8918573e-05
        %v1507 = vadd.f32 %v1506, 0.001143296
        %v1508 = vmul.f32 %v1494, %v1507
        %v1509 = vadd.f32 %v1508, 0.014752088
        %v1510 = vmul.f32 %v1494, %v1509
        %v1511 = vadd.f32 %v1510, 0.112945676
        %v1512 = vmul.f32 %v1494, %v1511
        %v1513 = vadd.f32 %v1512, 0.4994258
        %v1514 = vmul.f32 %v1494, %v1513
        %v1515 = vadd.f32 %v1514, 1.0
        %v1516 = vrcp.pop %v1515
        %v1517 = vmul.f32 %v1515, %v1516
        %v1518 = vsub.f32 1.0, %v1517
        %v1519 = vmul.f32 %v1516, %v1518
        %v1520 = vadd.f32 %v1516, %v1519
        %vm1521 = vweird.f32 %v1515
        %vm1522 = vweird.f32 %v1516
        %vm1523 = vmor %vm1521, %vm1522
        %v1524 = vsel %vm1523, %v1516, %v1520
        %v1525 = vand.u32 2147483647, %v1515
        %vm1526 = vcmp.eq.f32.partialorder %v1525, 8.507059e+37
        %v1527 = vand.u32 %v1515, 2147483648
        %v1528 = vor.u32 1.1754944e-38, %v1527
        %v1529 = vsel %vm1526, %v1528, %v1524
        %v1530 = vmul.f32 %v1505, %v1529
        %v1531 = vmin.f32 %v1530, 1.0
        %v1532 = vmax.f32 %v1531, -1.0
        %v1533 = vmul.f32 %v604, %v604
        %v1534 = vmin.f32 16.0, %v1533
        %v1535 = vmul.f32 %v1534, 2.1237322e-06
        %v1536 = vadd.f32 %v1535, 0.00028619796
        %v1537 = vmul.f32 %v1534, %v1536
        %v1538 = vadd.f32 %v1537, 0.0036580483
        %v1539 = vmul.f32 %v1534, %v1538
        %v1540 = vadd.f32 %v1539, 0.05243302
        %v1541 = vmul.f32 %v1534, %v1540
        %v1542 = vadd.f32 %v1541, 0.18741608
        %v1543 = vmul.f32 %v1534, %v1542
        %v1544 = vadd.f32 %v1543, 1.1283791
        %v1545 = vmul.f32 %v604, %v1544
        %v1546 = vmul.f32 %v1534, 3.8918573e-05
        %v1547 = vadd.f32 %v1546, 0.001143296
        %v1548 = vmul.f32 %v1534, %v1547
        %v1549 = vadd.f32 %v1548, 0.014752088
        %v1550 = vmul.f32 %v1534, %v1549
        %v1551 = vadd.f32 %v1550, 0.112945676
        %v1552 = vmul.f32 %v1534, %v1551
        %v1553 = vadd.f32 %v1552, 0.4994258
        %v1554 = vmul.f32 %v1534, %v1553
        %v1555 = vadd.f32 %v1554, 1.0
        %v1556 = vrcp.pop %v1555
        %v1557 = vmul.f32 %v1555, %v1556
        %v1558 = vsub.f32 1.0, %v1557
        %v1559 = vmul.f32 %v1556, %v1558
        %v1560 = vadd.f32 %v1556, %v1559
        %vm1561 = vweird.f32 %v1555
        %vm1562 = vweird.f32 %v1556
        %vm1563 = vmor %vm1561, %vm1562
        %v1564 = vsel %vm1563, %v1556, %v1560
        %v1565 = vand.u32 2147483647, %v1555
        %vm1566 = vcmp.eq.f32.partialorder %v1565, 8.507059e+37
        %v1567 = vand.u32 %v1555, 2147483648
        %v1568 = vor.u32 1.1754944e-38, %v1567
        %v1569 = vsel %vm1566, %v1568, %v1564
        %v1570 = vmul.f32 %v1545, %v1569
        %v1571 = vmin.f32 %v1570, 1.0
        %v1572 = vmax.f32 %v1571, -1.0
        %v1573 = vmul.f32 %v605, %v605
        %v1574 = vmin.f32 16.0, %v1573
        %v1575 = vmul.f32 %v1574, 2.1237322e-06
        %v1576 = vadd.f32 %v1575, 0.00028619796
        %v1577 = vmul.f32 %v1574, %v1576
        %v1578 = vadd.f32 %v1577, 0.0036580483
        %v1579 = vmul.f32 %v1574, %v1578
        %v1580 = vadd.f32 %v1579, 0.05243302
        %v1581 = vmul.f32 %v1574, %v1580
        %v1582 = vadd.f32 %v1581, 0.18741608
        %v1583 = vmul.f32 %v1574, %v1582
        %v1584 = vadd.f32 %v1583, 1.1283791
        %v1585 = vmul.f32 %v605, %v1584
        %v1586 = vmul.f32 %v1574, 3.8918573e-05
        %v1587 = vadd.f32 %v1586, 0.001143296
        %v1588 = vmul.f32 %v1574, %v1587
        %v1589 = vadd.f32 %v1588, 0.014752088
        %v1590 = vmul.f32 %v1574, %v1589
        %v1591 = vadd.f32 %v1590, 0.112945676
        %v1592 = vmul.f32 %v1574, %v1591
        %v1593 = vadd.f32 %v1592, 0.4994258
        %v1594 = vmul.f32 %v1574, %v1593
        %v1595 = vadd.f32 %v1594, 1.0
        %v1596 = vrcp.pop %v1595
        %v1597 = vmul.f32 %v1595, %v1596
        %v1598 = vsub.f32 1.0, %v1597
        %v1599 = vmul.f32 %v1596, %v1598
        %v1600 = vadd.f32 %v1596, %v1599
        %vm1601 = vweird.f32 %v1595
        %vm1602 = vweird.f32 %v1596
        %vm1603 = vmor %vm1601, %vm1602
        %v1604 = vsel %vm1603, %v1596, %v1600
        %v1605 = vand.u32 2147483647, %v1595
        %vm1606 = vcmp.eq.f32.partialorder %v1605, 8.507059e+37
        %v1607 = vand.u32 %v1595, 2147483648
        %v1608 = vor.u32 1.1754944e-38, %v1607
        %v1609 = vsel %vm1606, %v1608, %v1604
        %v1610 = vmul.f32 %v1585, %v1609
        %v1611 = vmin.f32 %v1610, 1.0
        %v1612 = vmax.f32 %v1611, -1.0
        %v1613 = vmul.f32 %v606, %v606
        %v1614 = vmin.f32 16.0, %v1613
        %v1615 = vmul.f32 %v1614, 2.1237322e-06
        %v1616 = vadd.f32 %v1615, 0.00028619796
        %v1617 = vmul.f32 %v1614, %v1616
        %v1618 = vadd.f32 %v1617, 0.0036580483
        %v1619 = vmul.f32 %v1614, %v1618
        %v1620 = vadd.f32 %v1619, 0.05243302
        %v1621 = vmul.f32 %v1614, %v1620
        %v1622 = vadd.f32 %v1621, 0.18741608
        %v1623 = vmul.f32 %v1614, %v1622
        %v1624 = vadd.f32 %v1623, 1.1283791
        %v1625 = vmul.f32 %v606, %v1624
        %v1626 = vmul.f32 %v1614, 3.8918573e-05
        %v1627 = vadd.f32 %v1626, 0.001143296
        %v1628 = vmul.f32 %v1614, %v1627
        %v1629 = vadd.f32 %v1628, 0.014752088
        %v1630 = vmul.f32 %v1614, %v1629
        %v1631 = vadd.f32 %v1630, 0.112945676
        %v1632 = vmul.f32 %v1614, %v1631
        %v1633 = vadd.f32 %v1632, 0.4994258
        %v1634 = vmul.f32 %v1614, %v1633
        %v1635 = vadd.f32 %v1634, 1.0
        %v1636 = vrcp.pop %v1635
        %v1637 = vmul.f32 %v1635, %v1636
        %v1638 = vsub.f32 1.0, %v1637
        %v1639 = vmul.f32 %v1636, %v1638
        %v1640 = vadd.f32 %v1636, %v1639
        %vm1641 = vweird.f32 %v1635
        %vm1642 = vweird.f32 %v1636
        %vm1643 = vmor %vm1641, %vm1642
        %v1644 = vsel %vm1643, %v1636, %v1640
        %v1645 = vand.u32 2147483647, %v1635
        %vm1646 = vcmp.eq.f32.partialorder %v1645, 8.507059e+37
        %v1647 = vand.u32 %v1635, 2147483648
        %v1648 = vor.u32 1.1754944e-38, %v1647
        %v1649 = vsel %vm1646, %v1648, %v1644
        %v1650 = vmul.f32 %v1625, %v1649
        %v1651 = vmin.f32 %v1650, 1.0
        %v1652 = vmax.f32 %v1651, -1.0
        %v1653 = vmul.f32 %v607, %v607
        %v1654 = vmin.f32 16.0, %v1653
        %v1655 = vmul.f32 %v1654, 2.1237322e-06
        %v1656 = vadd.f32 %v1655, 0.00028619796
        %v1657 = vmul.f32 %v1654, %v1656
        %v1658 = vadd.f32 %v1657, 0.0036580483
        %v1659 = vmul.f32 %v1654, %v1658
        %v1660 = vadd.f32 %v1659, 0.05243302
        %v1661 = vmul.f32 %v1654, %v1660
        %v1662 = vadd.f32 %v1661, 0.18741608
        %v1663 = vmul.f32 %v1654, %v1662
        %v1664 = vadd.f32 %v1663, 1.1283791
        %v1665 = vmul.f32 %v607, %v1664
        %v1666 = vmul.f32 %v1654, 3.8918573e-05
        %v1667 = vadd.f32 %v1666, 0.001143296
        %v1668 = vmul.f32 %v1654, %v1667
        %v1669 = vadd.f32 %v1668, 0.014752088
        %v1670 = vmul.f32 %v1654, %v1669
        %v1671 = vadd.f32 %v1670, 0.112945676
        %v1672 = vmul.f32 %v1654, %v1671
        %v1673 = vadd.f32 %v1672, 0.4994258
        %v1674 = vmul.f32 %v1654, %v1673
        %v1675 = vadd.f32 %v1674, 1.0
        %v1676 = vrcp.pop %v1675
        %v1677 = vmul.f32 %v1675, %v1676
        %v1678 = vsub.f32 1.0, %v1677
        %v1679 = vmul.f32 %v1676, %v1678
        %v1680 = vadd.f32 %v1676, %v1679
        %vm1681 = vweird.f32 %v1675
        %vm1682 = vweird.f32 %v1676
        %vm1683 = vmor %vm1681, %vm1682
        %v1684 = vsel %vm1683, %v1676, %v1680
        %v1685 = vand.u32 2147483647, %v1675
        %vm1686 = vcmp.eq.f32.partialorder %v1685, 8.507059e+37
        %v1687 = vand.u32 %v1675, 2147483648
        %v1688 = vor.u32 1.1754944e-38, %v1687
        %v1689 = vsel %vm1686, %v1688, %v1684
        %v1690 = vmul.f32 %v1665, %v1689
        %v1691 = vmin.f32 %v1690, 1.0
        %v1692 = vmax.f32 %v1691, -1.0
        %v1693 = vmul.f32 %v608, %v608
        %v1694 = vmin.f32 16.0, %v1693
        %v1695 = vmul.f32 %v1694, 2.1237322e-06
        %v1696 = vadd.f32 %v1695, 0.00028619796
        %v1697 = vmul.f32 %v1694, %v1696
        %v1698 = vadd.f32 %v1697, 0.0036580483
        %v1699 = vmul.f32 %v1694, %v1698
        %v1700 = vadd.f32 %v1699, 0.05243302
        %v1701 = vmul.f32 %v1694, %v1700
        %v1702 = vadd.f32 %v1701, 0.18741608
        %v1703 = vmul.f32 %v1694, %v1702
        %v1704 = vadd.f32 %v1703, 1.1283791
        %v1705 = vmul.f32 %v608, %v1704
        %v1706 = vmul.f32 %v1694, 3.8918573e-05
        %v1707 = vadd.f32 %v1706, 0.001143296
        %v1708 = vmul.f32 %v1694, %v1707
        %v1709 = vadd.f32 %v1708, 0.014752088
        %v1710 = vmul.f32 %v1694, %v1709
        %v1711 = vadd.f32 %v1710, 0.112945676
        %v1712 = vmul.f32 %v1694, %v1711
        %v1713 = vadd.f32 %v1712, 0.4994258
        %v1714 = vmul.f32 %v1694, %v1713
        %v1715 = vadd.f32 %v1714, 1.0
        %v1716 = vrcp.pop %v1715
        %v1717 = vmul.f32 %v1715, %v1716
        %v1718 = vsub.f32 1.0, %v1717
        %v1719 = vmul.f32 %v1716, %v1718
        %v1720 = vadd.f32 %v1716, %v1719
        %vm1721 = vweird.f32 %v1715
        %vm1722 = vweird.f32 %v1716
        %vm1723 = vmor %vm1721, %vm1722
        %v1724 = vsel %vm1723, %v1716, %v1720
        %v1725 = vand.u32 2147483647, %v1715
        %vm1726 = vcmp.eq.f32.partialorder %v1725, 8.507059e+37
        %v1727 = vand.u32 %v1715, 2147483648
        %v1728 = vor.u32 1.1754944e-38, %v1727
        %v1729 = vsel %vm1726, %v1728, %v1724
        %v1730 = vmul.f32 %v1705, %v1729
        %v1731 = vmin.f32 %v1730, 1.0
        %v1732 = vmax.f32 %v1731, -1.0
        %v1733 = vmul.f32 %v609, %v609
        %v1734 = vmin.f32 16.0, %v1733
        %v1735 = vmul.f32 %v1734, 2.1237322e-06
        %v1736 = vadd.f32 %v1735, 0.00028619796
        %v1737 = vmul.f32 %v1734, %v1736
        %v1738 = vadd.f32 %v1737, 0.0036580483
        %v1739 = vmul.f32 %v1734, %v1738
        %v1740 = vadd.f32 %v1739, 0.05243302
        %v1741 = vmul.f32 %v1734, %v1740
        %v1742 = vadd.f32 %v1741, 0.18741608
        %v1743 = vmul.f32 %v1734, %v1742
        %v1744 = vadd.f32 %v1743, 1.1283791
        %v1745 = vmul.f32 %v609, %v1744
        %v1746 = vmul.f32 %v1734, 3.8918573e-05
        %v1747 = vadd.f32 %v1746, 0.001143296
        %v1748 = vmul.f32 %v1734, %v1747
        %v1749 = vadd.f32 %v1748, 0.014752088
        %v1750 = vmul.f32 %v1734, %v1749
        %v1751 = vadd.f32 %v1750, 0.112945676
        %v1752 = vmul.f32 %v1734, %v1751
        %v1753 = vadd.f32 %v1752, 0.4994258
        %v1754 = vmul.f32 %v1734, %v1753
        %v1755 = vadd.f32 %v1754, 1.0
        %v1756 = vrcp.pop %v1755
        %v1757 = vmul.f32 %v1755, %v1756
        %v1758 = vsub.f32 1.0, %v1757
        %v1759 = vmul.f32 %v1756, %v1758
        %v1760 = vadd.f32 %v1756, %v1759
        %vm1761 = vweird.f32 %v1755
        %vm1762 = vweird.f32 %v1756
        %vm1763 = vmor %vm1761, %vm1762
        %v1764 = vsel %vm1763, %v1756, %v1760
        %v1765 = vand.u32 2147483647, %v1755
        %vm1766 = vcmp.eq.f32.partialorder %v1765, 8.507059e+37
        %v1767 = vand.u32 %v1755, 2147483648
        %v1768 = vor.u32 1.1754944e-38, %v1767
        %v1769 = vsel %vm1766, %v1768, %v1764
        %v1770 = vmul.f32 %v1745, %v1769
        %v1771 = vmin.f32 %v1770, 1.0
        %v1772 = vmax.f32 %v1771, -1.0
        %v1773 = vmul.f32 %v610, %v610
        %v1774 = vmin.f32 16.0, %v1773
        %v1775 = vmul.f32 %v1774, 2.1237322e-06
        %v1776 = vadd.f32 %v1775, 0.00028619796
        %v1777 = vmul.f32 %v1774, %v1776
        %v1778 = vadd.f32 %v1777, 0.0036580483
        %v1779 = vmul.f32 %v1774, %v1778
        %v1780 = vadd.f32 %v1779, 0.05243302
        %v1781 = vmul.f32 %v1774, %v1780
        %v1782 = vadd.f32 %v1781, 0.18741608
        %v1783 = vmul.f32 %v1774, %v1782
        %v1784 = vadd.f32 %v1783, 1.1283791
        %v1785 = vmul.f32 %v610, %v1784
        %v1786 = vmul.f32 %v1774, 3.8918573e-05
        %v1787 = vadd.f32 %v1786, 0.001143296
        %v1788 = vmul.f32 %v1774, %v1787
        %v1789 = vadd.f32 %v1788, 0.014752088
        %v1790 = vmul.f32 %v1774, %v1789
        %v1791 = vadd.f32 %v1790, 0.112945676
        %v1792 = vmul.f32 %v1774, %v1791
        %v1793 = vadd.f32 %v1792, 0.4994258
        %v1794 = vmul.f32 %v1774, %v1793
        %v1795 = vadd.f32 %v1794, 1.0
        %v1796 = vrcp.pop %v1795
        %v1797 = vmul.f32 %v1795, %v1796
        %v1798 = vsub.f32 1.0, %v1797
        %v1799 = vmul.f32 %v1796, %v1798
        %v1800 = vadd.f32 %v1796, %v1799
        %vm1801 = vweird.f32 %v1795
        %vm1802 = vweird.f32 %v1796
        %vm1803 = vmor %vm1801, %vm1802
        %v1804 = vsel %vm1803, %v1796, %v1800
        %v1805 = vand.u32 2147483647, %v1795
        %vm1806 = vcmp.eq.f32.partialorder %v1805, 8.507059e+37
        %v1807 = vand.u32 %v1795, 2147483648
        %v1808 = vor.u32 1.1754944e-38, %v1807
        %v1809 = vsel %vm1806, %v1808, %v1804
        %v1810 = vmul.f32 %v1785, %v1809
        %v1811 = vmin.f32 %v1810, 1.0
        %v1812 = vmax.f32 %v1811, -1.0
        %v1813 = vmul.f32 %v611, %v611
        %v1814 = vmin.f32 16.0, %v1813
        %v1815 = vmul.f32 %v1814, 2.1237322e-06
        %v1816 = vadd.f32 %v1815, 0.00028619796
        %v1817 = vmul.f32 %v1814, %v1816
        %v1818 = vadd.f32 %v1817, 0.0036580483
        %v1819 = vmul.f32 %v1814, %v1818
        %v1820 = vadd.f32 %v1819, 0.05243302
        %v1821 = vmul.f32 %v1814, %v1820
        %v1822 = vadd.f32 %v1821, 0.18741608
        %v1823 = vmul.f32 %v1814, %v1822
        %v1824 = vadd.f32 %v1823, 1.1283791
        %v1825 = vmul.f32 %v611, %v1824
        %v1826 = vmul.f32 %v1814, 3.8918573e-05
        %v1827 = vadd.f32 %v1826, 0.001143296
        %v1828 = vmul.f32 %v1814, %v1827
        %v1829 = vadd.f32 %v1828, 0.014752088
        %v1830 = vmul.f32 %v1814, %v1829
        %v1831 = vadd.f32 %v1830, 0.112945676
        %v1832 = vmul.f32 %v1814, %v1831
        %v1833 = vadd.f32 %v1832, 0.4994258
        %v1834 = vmul.f32 %v1814, %v1833
        %v1835 = vadd.f32 %v1834, 1.0
        %v1836 = vrcp.pop %v1835
        %v1837 = vmul.f32 %v1835, %v1836
        %v1838 = vsub.f32 1.0, %v1837
        %v1839 = vmul.f32 %v1836, %v1838
        %v1840 = vadd.f32 %v1836, %v1839
        %vm1841 = vweird.f32 %v1835
        %vm1842 = vweird.f32 %v1836
        %vm1843 = vmor %vm1841, %vm1842
        %v1844 = vsel %vm1843, %v1836, %v1840
        %v1845 = vand.u32 2147483647, %v1835
        %vm1846 = vcmp.eq.f32.partialorder %v1845, 8.507059e+37
        %v1847 = vand.u32 %v1835, 2147483648
        %v1848 = vor.u32 1.1754944e-38, %v1847
        %v1849 = vsel %vm1846, %v1848, %v1844
        %v1850 = vmul.f32 %v1825, %v1849
        %v1851 = vmin.f32 %v1850, 1.0
        %v1852 = vmax.f32 %v1851, -1.0
        %v1853 = vmul.f32 %v612, %v612
        %v1854 = vmin.f32 16.0, %v1853
        %v1855 = vmul.f32 %v1854, 2.1237322e-06
        %v1856 = vadd.f32 %v1855, 0.00028619796
        %v1857 = vmul.f32 %v1854, %v1856
        %v1858 = vadd.f32 %v1857, 0.0036580483
        %v1859 = vmul.f32 %v1854, %v1858
        %v1860 = vadd.f32 %v1859, 0.05243302
        %v1861 = vmul.f32 %v1854, %v1860
        %v1862 = vadd.f32 %v1861, 0.18741608
        %v1863 = vmul.f32 %v1854, %v1862
        %v1864 = vadd.f32 %v1863, 1.1283791
        %v1865 = vmul.f32 %v612, %v1864
        %v1866 = vmul.f32 %v1854, 3.8918573e-05
        %v1867 = vadd.f32 %v1866, 0.001143296
        %v1868 = vmul.f32 %v1854, %v1867
        %v1869 = vadd.f32 %v1868, 0.014752088
        %v1870 = vmul.f32 %v1854, %v1869
        %v1871 = vadd.f32 %v1870, 0.112945676
        %v1872 = vmul.f32 %v1854, %v1871
        %v1873 = vadd.f32 %v1872, 0.4994258
        %v1874 = vmul.f32 %v1854, %v1873
        %v1875 = vadd.f32 %v1874, 1.0
        %v1876 = vrcp.pop %v1875
        %v1877 = vmul.f32 %v1875, %v1876
        %v1878 = vsub.f32 1.0, %v1877
        %v1879 = vmul.f32 %v1876, %v1878
        %v1880 = vadd.f32 %v1876, %v1879
        %vm1881 = vweird.f32 %v1875
        %vm1882 = vweird.f32 %v1876
        %vm1883 = vmor %vm1881, %vm1882
        %v1884 = vsel %vm1883, %v1876, %v1880
        %v1885 = vand.u32 2147483647, %v1875
        %vm1886 = vcmp.eq.f32.partialorder %v1885, 8.507059e+37
        %v1887 = vand.u32 %v1875, 2147483648
        %v1888 = vor.u32 1.1754944e-38, %v1887
        %v1889 = vsel %vm1886, %v1888, %v1884
        %v1890 = vmul.f32 %v1865, %v1889
        %v1891 = vmin.f32 %v1890, 1.0
        %v1892 = vmax.f32 %v1891, -1.0
        %v1893 = vadd.f32 %v652, 1.0
        %v1894 = vadd.f32 %v692, 1.0
        %v1895 = vadd.f32 %v732, 1.0
        %v1896 = vadd.f32 %v772, 1.0
        %v1897 = vadd.f32 %v812, 1.0
        %v1898 = vadd.f32 %v852, 1.0
        %v1899 = vadd.f32 %v892, 1.0
        %v1900 = vadd.f32 %v932, 1.0
        %v1901 = vadd.f32 %v972, 1.0
        %v1902 = vadd.f32 %v1012, 1.0
        %v1903 = vadd.f32 %v1052, 1.0
        %v1904 = vadd.f32 %v1092, 1.0
        %v1905 = vadd.f32 %v1132, 1.0
        %v1906 = vadd.f32 %v1172, 1.0
        %v1907 = vadd.f32 %v1212, 1.0
        %v1908 = vadd.f32 %v1252, 1.0
        %v1909 = vadd.f32 %v1292, 1.0
        %v1910 = vadd.f32 %v1332, 1.0
        %v1911 = vadd.f32 %v1372, 1.0
        %v1912 = vadd.f32 %v1412, 1.0
        %v1913 = vadd.f32 %v1452, 1.0
        %v1914 = vadd.f32 %v1492, 1.0
        %v1915 = vadd.f32 %v1532, 1.0
        %v1916 = vadd.f32 %v1572, 1.0
        %v1917 = vadd.f32 %v1612, 1.0
        %v1918 = vadd.f32 %v1652, 1.0
        %v1919 = vadd.f32 %v1692, 1.0
        %v1920 = vadd.f32 %v1732, 1.0
        %v1921 = vadd.f32 %v1772, 1.0
        %v1922 = vadd.f32 %v1812, 1.0
        %v1923 = vadd.f32 %v1852, 1.0
        %v1924 = vadd.f32 %v1892, 1.0
        %v1925 = vmul.f32 %v549, %v1893
        %v1926 = vmul.f32 %v550, %v1894
        %v1927 = vmul.f32 %v551, %v1895
        %v1928 = vmul.f32 %v552, %v1896
        %v1929 = vmul.f32 %v553, %v1897
        %v1930 = vmul.f32 %v554, %v1898
        %v1931 = vmul.f32 %v555, %v1899
        %v1932 = vmul.f32 %v556, %v1900
        %v1933 = vmul.f32 %v557, %v1901
        %v1934 = vmul.f32 %v558, %v1902
        %v1935 = vmul.f32 %v559, %v1903
        %v1936 = vmul.f32 %v560, %v1904
        %v1937 = vmul.f32 %v561, %v1905
        %v1938 = vmul.f32 %v562, %v1906
        %v1939 = vmul.f32 %v563, %v1907
        %v1940 = vmul.f32 %v564, %v1908
        %v1941 = vmul.f32 %v565, %v1909
        %v1942 = vmul.f32 %v566, %v1910
        %v1943 = vmul.f32 %v567, %v1911
        %v1944 = vmul.f32 %v568, %v1912
        %v1945 = vmul.f32 %v569, %v1913
        %v1946 = vmul.f32 %v570, %v1914
        %v1947 = vmul.f32 %v571, %v1915
        %v1948 = vmul.f32 %v572, %v1916
        %v1949 = vmul.f32 %v573, %v1917
        %v1950 = vmul.f32 %v574, %v1918
        %v1951 = vmul.f32 %v575, %v1919
        %v1952 = vmul.f32 %v576, %v1920
        %v1953 = vmul.f32 %v577, %v1921
        %v1954 = vmul.f32 %v578, %v1922
        %v1955 = vmul.f32 %v579, %v1923
        %v1956 = vmul.f32 %v580, %v1924
        %v1957 = vld [vmem:[%s338] sm:$0xff]
        %v1958 = vld [vmem:[%s338 + $0x8] sm:$0xff]
        %v1959 = vld [vmem:[%s338 + $0x10] sm:$0xff]
        %v1960 = vld [vmem:[%s338 + $0x18] sm:$0xff]
        %v1961 = vld [vmem:[%s338 + $0x20] sm:$0xff]
        %v1962 = vld [vmem:[%s338 + $0x28] sm:$0xff]
        %v1963 = vld [vmem:[%s338 + $0x30] sm:$0xff]
        %v1964 = vld [vmem:[%s338 + $0x38] sm:$0xff]
        %v1965 = vld [vmem:[%s338 + $0x40] sm:$0xff]
        %v1966 = vld [vmem:[%s338 + $0x48] sm:$0xff]
        %v1967 = vld [vmem:[%s338 + $0x50] sm:$0xff]
        %v1968 = vld [vmem:[%s338 + $0x58] sm:$0xff]
        %v1969 = vld [vmem:[%s338 + $0x60] sm:$0xff]
        %v1970 = vld [vmem:[%s338 + $0x68] sm:$0xff]
        %v1971 = vld [vmem:[%s338 + $0x70] sm:$0xff]
        %v1972 = vld [vmem:[%s338 + $0x78] sm:$0xff]
        %v1973 = vld [vmem:[%s338 + $0x80] sm:$0xff]
        %v1974 = vld [vmem:[%s338 + $0x88] sm:$0xff]
        %v1975 = vld [vmem:[%s338 + $0x90] sm:$0xff]
        %v1976 = vld [vmem:[%s338 + $0x98] sm:$0xff]
        %v1977 = vld [vmem:[%s338 + $0xa0] sm:$0xff]
        %v1978 = vld [vmem:[%s338 + $0xa8] sm:$0xff]
        %v1979 = vld [vmem:[%s338 + $0xb0] sm:$0xff]
        %v1980 = vld [vmem:[%s338 + $0xb8] sm:$0xff]
        %v1981 = vld [vmem:[%s338 + $0xc0] sm:$0xff]
        %v1982 = vld [vmem:[%s338 + $0xc8] sm:$0xff]
        %v1983 = vld [vmem:[%s338 + $0xd0] sm:$0xff]
        %v1984 = vld [vmem:[%s338 + $0xd8] sm:$0xff]
        %v1985 = vld [vmem:[%s338 + $0xe0] sm:$0xff]
        %v1986 = vld [vmem:[%s338 + $0xe8] sm:$0xff]
        %v1987 = vld [vmem:[%s338 + $0xf0] sm:$0xff]
        %v1988 = vld [vmem:[%s338 + $0xf8] sm:$0xff]
        %v1989 = vld [vmem:[#allocation7] sm:$0xff]
        %v1990 = vld [vmem:[#allocation7 + $0x8] sm:$0xff]
        %v1991 = vld [vmem:[#allocation7 + $0x10] sm:$0xff]
        %v1992 = vld [vmem:[#allocation7 + $0x18] sm:$0xff]
        %v1993 = vld [vmem:[#allocation7 + $0x20] sm:$0xff]
        %v1994 = vld [vmem:[#allocation7 + $0x28] sm:$0xff]
        %v1995 = vld [vmem:[#allocation7 + $0x30] sm:$0xff]
        %v1996 = vld [vmem:[#allocation7 + $0x38] sm:$0xff]
        %v1997 = vld [vmem:[#allocation7 + $0x40] sm:$0xff]
        %v1998 = vld [vmem:[#allocation7 + $0x48] sm:$0xff]
        %v1999 = vld [vmem:[#allocation7 + $0x50] sm:$0xff]
        %v2000 = vld [vmem:[#allocation7 + $0x58] sm:$0xff]
        %v2001 = vld [vmem:[#allocation7 + $0x60] sm:$0xff]
        %v2002 = vld [vmem:[#allocation7 + $0x68] sm:$0xff]
        %v2003 = vld [vmem:[#allocation7 + $0x70] sm:$0xff]
        %v2004 = vld [vmem:[#allocation7 + $0x78] sm:$0xff]
        %2005 = vmatpush.msra.mxu0 %v2004
        %2006 = vmatpush.msra.mxu0 %v2003
        %2007 = vmatpush.msra.mxu0 %v2002
        %2008 = vmatpush.msra.mxu0 %v2001
        %2009 = vmatpush.msra.mxu0 %v2000
        %2010 = vmatpush.msra.mxu0 %v1999
        %2011 = vmatpush.msra.mxu0 %v1998
        %2012 = vmatpush.msra.mxu0 %v1997
        %2013 = vmatpush.msra.mxu0 %v1996
        %2014 = vmatpush.msra.mxu0 %v1995
        %2015 = vmatpush.msra.mxu0 %v1994
        %2016 = vmatpush.msra.mxu0 %v1993
        %2017 = vmatpush.msra.mxu0 %v1992
        %2018 = vmatpush.msra.mxu0 %v1991
        %2019 = vmatpush.msra.mxu0 %v1990
        %2020 = vmatpush.msra.mxu0 %v1989
        %2021 = vmatmul.f32.gmra.mxu0 %v1925
        %v2022 = vpop.f32.mrf.mxu0
        %v2023 = vadd.f32 0.0, %v2022
        %2024 = vmatmul.f32.gmra.mxu0 %v1926
        %v2025 = vpop.f32.mrf.mxu0
        %v2026 = vadd.f32 0.0, %v2025
        %2027 = vmatmul.f32.gmra.mxu0 %v1927
        %v2028 = vpop.f32.mrf.mxu0
        %v2029 = vadd.f32 0.0, %v2028
        %2030 = vmatmul.f32.gmra.mxu0 %v1928
        %v2031 = vpop.f32.mrf.mxu0
        %v2032 = vadd.f32 0.0, %v2031
        %2033 = vmatmul.f32.gmra.mxu0 %v1929
        %v2034 = vpop.f32.mrf.mxu0
        %v2035 = vadd.f32 0.0, %v2034
        %2036 = vmatmul.f32.gmra.mxu0 %v1930
        %v2037 = vpop.f32.mrf.mxu0
        %v2038 = vadd.f32 0.0, %v2037
        %2039 = vmatmul.f32.gmra.mxu0 %v1931
        %v2040 = vpop.f32.mrf.mxu0
        %v2041 = vadd.f32 0.0, %v2040
        %2042 = vmatmul.f32.gmra.mxu0 %v1932
        %v2043 = vpop.f32.mrf.mxu0
        %v2044 = vadd.f32 0.0, %v2043
        %2045 = vmatmul.f32.gmra.mxu0 %v1933
        %v2046 = vpop.f32.mrf.mxu0
        %v2047 = vadd.f32 0.0, %v2046
        %2048 = vmatmul.f32.gmra.mxu0 %v1934
        %v2049 = vpop.f32.mrf.mxu0
        %v2050 = vadd.f32 0.0, %v2049
        %2051 = vmatmul.f32.gmra.mxu0 %v1935
        %v2052 = vpop.f32.mrf.mxu0
        %v2053 = vadd.f32 0.0, %v2052
        %2054 = vmatmul.f32.gmra.mxu0 %v1936
        %v2055 = vpop.f32.mrf.mxu0
        %v2056 = vadd.f32 0.0, %v2055
        %2057 = vmatmul.f32.gmra.mxu0 %v1937
        %v2058 = vpop.f32.mrf.mxu0
        %v2059 = vadd.f32 0.0, %v2058
        %2060 = vmatmul.f32.gmra.mxu0 %v1938
        %v2061 = vpop.f32.mrf.mxu0
        %v2062 = vadd.f32 0.0, %v2061
        %2063 = vmatmul.f32.gmra.mxu0 %v1939
        %v2064 = vpop.f32.mrf.mxu0
        %v2065 = vadd.f32 0.0, %v2064
        %2066 = vmatmul.f32.gmra.mxu0 %v1940
        %v2067 = vpop.f32.mrf.mxu0
        %v2068 = vadd.f32 0.0, %v2067
        %2069 = vmatmul.f32.gmra.mxu0 %v1941
        %v2070 = vpop.f32.mrf.mxu0
        %v2071 = vadd.f32 0.0, %v2070
        %2072 = vmatmul.f32.gmra.mxu0 %v1942
        %v2073 = vpop.f32.mrf.mxu0
        %v2074 = vadd.f32 0.0, %v2073
        %2075 = vmatmul.f32.gmra.mxu0 %v1943
        %v2076 = vpop.f32.mrf.mxu0
        %v2077 = vadd.f32 0.0, %v2076
        %2078 = vmatmul.f32.gmra.mxu0 %v1944
        %v2079 = vpop.f32.mrf.mxu0
        %v2080 = vadd.f32 0.0, %v2079
        %2081 = vmatmul.f32.gmra.mxu0 %v1945
        %v2082 = vpop.f32.mrf.mxu0
        %v2083 = vadd.f32 0.0, %v2082
        %2084 = vmatmul.f32.gmra.mxu0 %v1946
        %v2085 = vpop.f32.mrf.mxu0
        %v2086 = vadd.f32 0.0, %v2085
        %2087 = vmatmul.f32.gmra.mxu0 %v1947
        %v2088 = vpop.f32.mrf.mxu0
        %v2089 = vadd.f32 0.0, %v2088
        %2090 = vmatmul.f32.gmra.mxu0 %v1948
        %v2091 = vpop.f32.mrf.mxu0
        %v2092 = vadd.f32 0.0, %v2091
        %2093 = vmatmul.f32.gmra.mxu0 %v1949
        %v2094 = vpop.f32.mrf.mxu0
        %v2095 = vadd.f32 0.0, %v2094
        %2096 = vmatmul.f32.gmra.mxu0 %v1950
        %v2097 = vpop.f32.mrf.mxu0
        %v2098 = vadd.f32 0.0, %v2097
        %2099 = vmatmul.f32.gmra.mxu0 %v1951
        %v2100 = vpop.f32.mrf.mxu0
        %v2101 = vadd.f32 0.0, %v2100
        %2102 = vmatmul.f32.gmra.mxu0 %v1952
        %v2103 = vpop.f32.mrf.mxu0
        %v2104 = vadd.f32 0.0, %v2103
        %2105 = vmatmul.f32.gmra.mxu0 %v1953
        %v2106 = vpop.f32.mrf.mxu0
        %v2107 = vadd.f32 0.0, %v2106
        %2108 = vmatmul.f32.gmra.mxu0 %v1954
        %v2109 = vpop.f32.mrf.mxu0
        %v2110 = vadd.f32 0.0, %v2109
        %2111 = vmatmul.f32.gmra.mxu0 %v1955
        %v2112 = vpop.f32.mrf.mxu0
        %v2113 = vadd.f32 0.0, %v2112
        %2114 = vmatmul.f32.gmra.mxu0 %v1956
        %v2115 = vpop.f32.mrf.mxu0
        %v2116 = vadd.f32 0.0, %v2115
        %2117 = vdwg.mxu0
        %v2118 = vadd.f32 %v1957, %v2023
        %v2119 = vadd.f32 %v1958, %v2026
        %v2120 = vadd.f32 %v1959, %v2029
        %v2121 = vadd.f32 %v1960, %v2032
        %v2122 = vadd.f32 %v1961, %v2035
        %v2123 = vadd.f32 %v1962, %v2038
        %v2124 = vadd.f32 %v1963, %v2041
        %v2125 = vadd.f32 %v1964, %v2044
        %v2126 = vadd.f32 %v1965, %v2047
        %v2127 = vadd.f32 %v1966, %v2050
        %v2128 = vadd.f32 %v1967, %v2053
        %v2129 = vadd.f32 %v1968, %v2056
        %v2130 = vadd.f32 %v1969, %v2059
        %v2131 = vadd.f32 %v1970, %v2062
        %v2132 = vadd.f32 %v1971, %v2065
        %v2133 = vadd.f32 %v1972, %v2068
        %v2134 = vadd.f32 %v1973, %v2071
        %v2135 = vadd.f32 %v1974, %v2074
        %v2136 = vadd.f32 %v1975, %v2077
        %v2137 = vadd.f32 %v1976, %v2080
        %v2138 = vadd.f32 %v1977, %v2083
        %v2139 = vadd.f32 %v1978, %v2086
        %v2140 = vadd.f32 %v1979, %v2089
        %v2141 = vadd.f32 %v1980, %v2092
        %v2142 = vadd.f32 %v1981, %v2095
        %v2143 = vadd.f32 %v1982, %v2098
        %v2144 = vadd.f32 %v1983, %v2101
        %v2145 = vadd.f32 %v1984, %v2104
        %v2146 = vadd.f32 %v1985, %v2107
        %v2147 = vadd.f32 %v1986, %v2110
        %v2148 = vadd.f32 %v1987, %v2113
        %v2149 = vadd.f32 %v1988, %v2116
        %2150 = vst [vmem:[%s338] sm:$0xff] %v2118
        %2151 = vst [vmem:[%s338 + $0x8] sm:$0xff] %v2119
        %2152 = vst [vmem:[%s338 + $0x10] sm:$0xff] %v2120
        %2153 = vst [vmem:[%s338 + $0x18] sm:$0xff] %v2121
        %2154 = vst [vmem:[%s338 + $0x20] sm:$0xff] %v2122
        %2155 = vst [vmem:[%s338 + $0x28] sm:$0xff] %v2123
        %2156 = vst [vmem:[%s338 + $0x30] sm:$0xff] %v2124
        %2157 = vst [vmem:[%s338 + $0x38] sm:$0xff] %v2125
        %2158 = vst [vmem:[%s338 + $0x40] sm:$0xff] %v2126
        %2159 = vst [vmem:[%s338 + $0x48] sm:$0xff] %v2127
        %2160 = vst [vmem:[%s338 + $0x50] sm:$0xff] %v2128
        %2161 = vst [vmem:[%s338 + $0x58] sm:$0xff] %v2129
        %2162 = vst [vmem:[%s338 + $0x60] sm:$0xff] %v2130
        %2163 = vst [vmem:[%s338 + $0x68] sm:$0xff] %v2131
        %2164 = vst [vmem:[%s338 + $0x70] sm:$0xff] %v2132
        %2165 = vst [vmem:[%s338 + $0x78] sm:$0xff] %v2133
        %2166 = vst [vmem:[%s338 + $0x80] sm:$0xff] %v2134
        %2167 = vst [vmem:[%s338 + $0x88] sm:$0xff] %v2135
        %2168 = vst [vmem:[%s338 + $0x90] sm:$0xff] %v2136
        %2169 = vst [vmem:[%s338 + $0x98] sm:$0xff] %v2137
        %2170 = vst [vmem:[%s338 + $0xa0] sm:$0xff] %v2138
        %2171 = vst [vmem:[%s338 + $0xa8] sm:$0xff] %v2139
        %2172 = vst [vmem:[%s338 + $0xb0] sm:$0xff] %v2140
        %2173 = vst [vmem:[%s338 + $0xb8] sm:$0xff] %v2141
        %2174 = vst [vmem:[%s338 + $0xc0] sm:$0xff] %v2142
        %2175 = vst [vmem:[%s338 + $0xc8] sm:$0xff] %v2143
        %2176 = vst [vmem:[%s338 + $0xd0] sm:$0xff] %v2144
        %2177 = vst [vmem:[%s338 + $0xd8] sm:$0xff] %v2145
        %2178 = vst [vmem:[%s338 + $0xe0] sm:$0xff] %v2146
        %2179 = vst [vmem:[%s338 + $0xe8] sm:$0xff] %v2147
        %2180 = vst [vmem:[%s338 + $0xf0] sm:$0xff] %v2148
        %2181 = vst [vmem:[%s338 + $0xf8] sm:$0xff] %v2149
        // Predicated region
        $region57: #{tpu_custom_call.1} parent=39 // pred_check
          %p2182 = pneg %p348
        $region58: #{tpu_custom_call.1} parent=39 // pred_check_branch
          %2184 = sbr.rel (%p2182) target = $region60
        $region59: #{tpu_custom_call.1} parent=39 // pred_region
          %v2185 = vld [vmem:[%s338] sm:$0xff]
          %v2186 = vld [vmem:[%s338 + $0x8] sm:$0xff]
          %v2187 = vld [vmem:[%s338 + $0x10] sm:$0xff]
          %v2188 = vld [vmem:[%s338 + $0x18] sm:$0xff]
          %v2189 = vld [vmem:[%s338 + $0x20] sm:$0xff]
          %v2190 = vld [vmem:[%s338 + $0x28] sm:$0xff]
          %v2191 = vld [vmem:[%s338 + $0x30] sm:$0xff]
          %v2192 = vld [vmem:[%s338 + $0x38] sm:$0xff]
          %v2193 = vld [vmem:[%s338 + $0x40] sm:$0xff]
          %v2194 = vld [vmem:[%s338 + $0x48] sm:$0xff]
          %v2195 = vld [vmem:[%s338 + $0x50] sm:$0xff]
          %v2196 = vld [vmem:[%s338 + $0x58] sm:$0xff]
          %v2197 = vld [vmem:[%s338 + $0x60] sm:$0xff]
          %v2198 = vld [vmem:[%s338 + $0x68] sm:$0xff]
          %v2199 = vld [vmem:[%s338 + $0x70] sm:$0xff]
          %v2200 = vld [vmem:[%s338 + $0x78] sm:$0xff]
          %v2201 = vld [vmem:[%s338 + $0x80] sm:$0xff]
          %v2202 = vld [vmem:[%s338 + $0x88] sm:$0xff]
          %v2203 = vld [vmem:[%s338 + $0x90] sm:$0xff]
          %v2204 = vld [vmem:[%s338 + $0x98] sm:$0xff]
          %v2205 = vld [vmem:[%s338 + $0xa0] sm:$0xff]
          %v2206 = vld [vmem:[%s338 + $0xa8] sm:$0xff]
          %v2207 = vld [vmem:[%s338 + $0xb0] sm:$0xff]
          %v2208 = vld [vmem:[%s338 + $0xb8] sm:$0xff]
          %v2209 = vld [vmem:[%s338 + $0xc0] sm:$0xff]
          %v2210 = vld [vmem:[%s338 + $0xc8] sm:$0xff]
          %v2211 = vld [vmem:[%s338 + $0xd0] sm:$0xff]
          %v2212 = vld [vmem:[%s338 + $0xd8] sm:$0xff]
          %v2213 = vld [vmem:[%s338 + $0xe0] sm:$0xff]
          %v2214 = vld [vmem:[%s338 + $0xe8] sm:$0xff]
          %v2215 = vld [vmem:[%s338 + $0xf0] sm:$0xff]
          %v2216 = vld [vmem:[%s338 + $0xf8] sm:$0xff]
          %v2217 = vld [vmem:[%s346] sm:$0x1]
          %v2219 = vperm.slane %v2217, 0
          %v2221 = vadd.f32 %v2185, %v2219
          %v2222 = vadd.f32 %v2186, %v2219
          %v2223 = vadd.f32 %v2187, %v2219
          %v2224 = vadd.f32 %v2188, %v2219
          %v2225 = vadd.f32 %v2189, %v2219
          %v2226 = vadd.f32 %v2190, %v2219
          %v2227 = vadd.f32 %v2191, %v2219
          %v2228 = vadd.f32 %v2192, %v2219
          %v2229 = vadd.f32 %v2193, %v2219
          %v2230 = vadd.f32 %v2194, %v2219
          %v2231 = vadd.f32 %v2195, %v2219
          %v2232 = vadd.f32 %v2196, %v2219
          %v2233 = vadd.f32 %v2197, %v2219
          %v2234 = vadd.f32 %v2198, %v2219
          %v2235 = vadd.f32 %v2199, %v2219
          %v2236 = vadd.f32 %v2200, %v2219
          %v2237 = vadd.f32 %v2201, %v2219
          %v2238 = vadd.f32 %v2202, %v2219
          %v2239 = vadd.f32 %v2203, %v2219
          %v2240 = vadd.f32 %v2204, %v2219
          %v2241 = vadd.f32 %v2205, %v2219
          %v2242 = vadd.f32 %v2206, %v2219
          %v2243 = vadd.f32 %v2207, %v2219
          %v2244 = vadd.f32 %v2208, %v2219
          %v2245 = vadd.f32 %v2209, %v2219
          %v2246 = vadd.f32 %v2210, %v2219
          %v2247 = vadd.f32 %v2211, %v2219
          %v2248 = vadd.f32 %v2212, %v2219
          %v2249 = vadd.f32 %v2213, %v2219
          %v2250 = vadd.f32 %v2214, %v2219
          %v2251 = vadd.f32 %v2215, %v2219
          %v2252 = vadd.f32 %v2216, %v2219
          %2253 = vst [vmem:[%s338] sm:$0xff] %v2221
          %2254 = vst [vmem:[%s338 + $0x8] sm:$0xff] %v2222
          %2255 = vst [vmem:[%s338 + $0x10] sm:$0xff] %v2223
          %2256 = vst [vmem:[%s338 + $0x18] sm:$0xff] %v2224
          %2257 = vst [vmem:[%s338 + $0x20] sm:$0xff] %v2225
          %2258 = vst [vmem:[%s338 + $0x28] sm:$0xff] %v2226
          %2259 = vst [vmem:[%s338 + $0x30] sm:$0xff] %v2227
          %2260 = vst [vmem:[%s338 + $0x38] sm:$0xff] %v2228
          %2261 = vst [vmem:[%s338 + $0x40] sm:$0xff] %v2229
          %2262 = vst [vmem:[%s338 + $0x48] sm:$0xff] %v2230
          %2263 = vst [vmem:[%s338 + $0x50] sm:$0xff] %v2231
          %2264 = vst [vmem:[%s338 + $0x58] sm:$0xff] %v2232
          %2265 = vst [vmem:[%s338 + $0x60] sm:$0xff] %v2233
          %2266 = vst [vmem:[%s338 + $0x68] sm:$0xff] %v2234
          %2267 = vst [vmem:[%s338 + $0x70] sm:$0xff] %v2235
          %2268 = vst [vmem:[%s338 + $0x78] sm:$0xff] %v2236
          %2269 = vst [vmem:[%s338 + $0x80] sm:$0xff] %v2237
          %2270 = vst [vmem:[%s338 + $0x88] sm:$0xff] %v2238
          %2271 = vst [vmem:[%s338 + $0x90] sm:$0xff] %v2239
          %2272 = vst [vmem:[%s338 + $0x98] sm:$0xff] %v2240
          %2273 = vst [vmem:[%s338 + $0xa0] sm:$0xff] %v2241
          %2274 = vst [vmem:[%s338 + $0xa8] sm:$0xff] %v2242
          %2275 = vst [vmem:[%s338 + $0xb0] sm:$0xff] %v2243
          %2276 = vst [vmem:[%s338 + $0xb8] sm:$0xff] %v2244
          %2277 = vst [vmem:[%s338 + $0xc0] sm:$0xff] %v2245
          %2278 = vst [vmem:[%s338 + $0xc8] sm:$0xff] %v2246
          %2279 = vst [vmem:[%s338 + $0xd0] sm:$0xff] %v2247
          %2280 = vst [vmem:[%s338 + $0xd8] sm:$0xff] %v2248
          %2281 = vst [vmem:[%s338 + $0xe0] sm:$0xff] %v2249
          %2282 = vst [vmem:[%s338 + $0xe8] sm:$0xff] %v2250
          %2283 = vst [vmem:[%s338 + $0xf0] sm:$0xff] %v2251
          %2284 = vst [vmem:[%s338 + $0xf8] sm:$0xff] %v2252
        $region60: #{tpu_custom_call.1} parent=39 // pred_fallthru
          _
        %s2285 = sand.u32 %s184, 1
        %s2286 = scalar_lea.sflag [#allocation4], %s2285
        %s2287 = sand.u32 %s184, 1
        %s2288 = smul.addr %s2287, 256
        %s2289 = scalar_lea.vmem [#allocation8], %s2288
        // Predicated region
        $region61: #{tpu_custom_call.1} parent=39 // pred_check
          %p2290 = pneg %p194
        $region62: #{tpu_custom_call.1} parent=39 // pred_check_branch
          %2292 = sbr.rel (%p2290) target = $region64
        $region63: #{tpu_custom_call.1} parent=39 // pred_region
          %s2293 = smul.u32 32, %s28
          %2295 = vsyncadd %s2286, 0
          %s2296 = sadd.s32 %s29, %s2293
          %s2297 = smul.addr %s2296, 8
          %s2298 = scalar_lea.hbm %s5, %s2297
          %s2299 = sshll.u32 %s2289, 4
          %s2300 = int_to_ptr.vmem [resolvable:$true] %s2299
          %s2301 = sshll.u32 %s2298, 4
          %s2302 = int_to_ptr.hbm [resolvable:$true] %s2301
          %2307 = dma.vmem_to_hbm [thread:$0]  %s2300, 4096, %s2302, %s2286, 128, 128, 8
        $region64: #{tpu_custom_call.1} parent=39 // pred_fallthru
          _
      $region40: #{tpu_custom_call.1} parent=5 // pred_fallthru
        _
      %p2308 = scmp.le.s32.totalorder 2, %s18
      // Predicated region
      $region65: #{tpu_custom_call.1} parent=5 // pred_check
        %p2309 = pneg %p2308
      $region66: #{tpu_custom_call.1} parent=5 // pred_check_branch
        %2311 = sbr.rel (%p2309) target = $region68
      $region67: #{tpu_custom_call.1} parent=5 // pred_region
        %s2312 = ssub.s32 %s18, 2
        // Predicated region
        $region69: #{tpu_custom_call.1} parent=67 // pred_check
          %p2313 = pneg %p200
        $region70: #{tpu_custom_call.1} parent=67 // pred_check_branch
          %2315 = sbr.rel (%p2313) target = $region72
        $region71: #{tpu_custom_call.1} parent=67 // pred_region
          %s2316 = sand.u32 %s185, 1
          %s2317 = scalar_lea.sflag [#allocation4], %s2316
          %s2318 = sand.u32 %s185, 1
          %s2319 = smul.addr %s2318, 256
          %s2320 = scalar_lea.vmem [#allocation8], %s2319
          %2322 = dma.done %s2317, 4096
        $region72: #{tpu_custom_call.1} parent=67 // pred_fallthru
          _
      $region68: #{tpu_custom_call.1} parent=5 // pred_fallthru
        _
    $region6: #{tpu_custom_call.1} parent=1 // loop_footer
      %s22 = sadd.s32 1, %s18
    $region7: #{tpu_custom_call.1} parent=1 // loop_footer_branch
      %17 = sbr.rel target = $region3
    $region8: #{tpu_custom_call.1} parent=1 // loop_exit
      _
    %2323 = vsyncpa [#allocation3], 1
    %s2324 = scalar_lea.sflag [#allocation3], 1
    %2325 = vsyncpa %s2324, 1
    %2326 = vsyncpa [#allocation6], 1
    %2327 = vsyncpa [#allocation4], 1
    %s2328 = scalar_lea.sflag [#allocation4], 1
    %2329 = vsyncpa %s2328, 1

</llo_original>
